<compile_context>
chip_gen: v5e
topology: v5e:2x2
jax: 0.10.0
libtpu: 0.0.40
codegen_flags: <defaults>
</compile_context>

<pallas_src>
import numpy as np
import jax
import jax.numpy as jnp
from jax import lax
from jax.experimental import pallas as pl
from jax.experimental.pallas import tpu as pltpu

REAL_MIN = 1e-30
WEI_SHAPE_MIN = 0.1
WEI_SHAPE_MAX = 100.0
THETA_MAX = 1000.0
EULER_GAMMA = 0.5772
BN_EPS = 1e-5
SAMPLE_NUM = 50
S_TILE = 10                      # samples per grid step (must divide SAMPLE_NUM)

# Lanczos lgamma (valid for x > 0). Used only for lgamma(1 + 1/k) in-kernel;
# input-only lgamma terms are computed with exact lax.lgamma in the wrapper.
_LANCZOS_G = 7.0
_LANCZOS = (0.99999999999980993, 676.5203681218851, -1259.1392167224028,
            771.32342877765313, -176.61502916214059, 12.507343278686905,
            -0.13857109526572012, 9.9843695780195716e-6, 1.5056327351493116e-7)
_LOG_SQRT_2PI = 0.9189385332046727


def _lgamma(x):
    z = x - 1.0
    a = jnp.full_like(z, _LANCZOS[0])
    for i in range(1, len(_LANCZOS)):
        a = a + _LANCZOS[i] / (z + float(i))
    t = z + _LANCZOS_G + 0.5
    return _LOG_SQRT_2PI + (z + 0.5) * jnp.log(t) - t + jnp.log(a)


def _softplus(x):
    # matches F.softplus(beta=1, threshold=20)
    return jnp.where(x > 20.0, x, jnp.log(1.0 + jnp.exp(jnp.minimum(x, 20.0))))


def _log_max(x):
    return jnp.log(jnp.maximum(x, REAL_MIN))


def sawtooth_kernel(x_ref, w1_ref, b1_ref, gamma_ref, beta_ref,
                    prior_t_ref, w2h_ref, w2p_ref, b2_ref,
                    eps_ref, rho_ref, alpha_t_ref, bow_ref,
                    rec_ref, kl_ref, phi_t_ref, phi_theta_t_ref, theta_ref,
                    inv_k_sc, l_sc, gam_sc, acc_sc):
    s = pl.program_id(0)
    K = prior_t_ref.shape[1]

    # ---- step 0: h_encoder + BatchNorm1d (batch stats) + ReLU + shape/scale ----
    @pl.when(s == 0)
    def _():
        x = x_ref[...]                                        # (B, d_in)
        h = jnp.dot(x, w1_ref[...], preferred_element_type=jnp.float32) + b1_ref[...]
        mu = jnp.mean(h, axis=0, keepdims=True)
        var = jnp.mean((h - mu) ** 2, axis=0, keepdims=True)  # biased variance
        h_hat = (h - mu) * lax.rsqrt(var + BN_EPS)
        hidden = jnp.maximum(gamma_ref[...] * h_hat + beta_ref[...], 0.0)

        # fused shape_scale_encoder: one (B, 2K) result, sliced into k / l
        z = (jnp.dot(hidden, w2h_ref[...], preferred_element_type=jnp.float32)
             + jnp.dot(prior_t_ref[...], w2p_ref[...],
                       preferred_element_type=jnp.float32)
             + b2_ref[...])                                   # (B, 2K)
        k = jnp.clip(_softplus(z[:, :K]), WEI_SHAPE_MIN, WEI_SHAPE_MAX)
        inv_k = 1.0 / k
        gam = jnp.exp(_lgamma(1.0 + inv_k))                   # Gamma(1 + 1/k)
        l = jnp.clip(_softplus(z[:, K:]) / gam, REAL_MIN, 9999.0)

        inv_k_sc[...] = inv_k
        l_sc[...] = l
        gam_sc[...] = gam
        acc_sc[...] = jnp.zeros_like(acc_sc)

    # ---- every step: vectorized Weibull reparameterize on this sample tile ----
    inv_k = inv_k_sc[...]                                     # (B, K)
    l = l_sc[...]                                             # (B, K)
    eps = eps_ref[...]                                        # (S_TILE, B, K)
    base = -_log_max(1.0 - eps)                               # >= 0
    log_base = jnp.log(jnp.maximum(base, REAL_MIN))
    powed = jnp.where(base > 0.0,
                      jnp.exp(inv_k[None] * log_base),
                      0.0)                                    # base ** (1/k)
    theta_s = jnp.clip(l[None] * powed, REAL_MIN, THETA_MAX)
    acc_sc[...] += jnp.sum(theta_s, axis=0)

    # ---- last step: decoder, KL and reconstruction partials ----
    @pl.when(s == pl.num_programs(0) - 1)
    def _():
        theta = acc_sc[...] * (1.0 / SAMPLE_NUM)              # (B, K)
        theta_ref[...] = theta

        # lane-dense decoder: phi.T = softmax over V, phi_theta.T = theta @ phi.T
        wT = (jnp.dot(rho_ref[...], alpha_t_ref[...],
                      preferred_element_type=jnp.float32) + REAL_MIN)  # (K, V)
        wT = wT - jnp.max(wT, axis=1, keepdims=True)
        ew = jnp.exp(wT)
        phi_t = ew * pl.reciprocal(jnp.sum(ew, axis=1, keepdims=True), approx=True)
        phi_theta_t = jnp.dot(theta, phi_t,
                              preferred_element_type=jnp.float32)      # (B, V)
        phi_t_ref[...] = phi_t
        phi_theta_t_ref[...] = phi_theta_t

        # partial KL_GamWei: lgamma(prior) + constant part3 folded in wrapper
        prior_t = prior_t_ref[...]
        kl_elem = (prior_t * _log_max(l)
                   - EULER_GAMMA * prior_t * inv_k
                   + _log_max(inv_k)
                   - l * gam_sc[...])
        kl_ref[...] = jnp.sum(jnp.sum(kl_elem, axis=1, keepdims=True),
                              axis=0, keepdims=True)

        # partial Poisson likelihood: lgamma(bow + 1) folded in wrapper
        bow = bow_ref[...]                                    # (B, V)
        lik = bow * _log_max(phi_theta_t) - phi_theta_t
        rec_ref[...] = jnp.sum(jnp.sum(lik, axis=1, keepdims=True),
                               axis=0, keepdims=True)


def init_params(key, d_in, d_dim, topic_k, pre_topic_k, emb_dim, vocab):
    ks = jax.random.split(key, 6)

    def lin(k, fan_in, shape):
        bound = 1.0 / np.sqrt(fan_in)
        return jax.random.uniform(k, shape, jnp.float32, -bound, bound)

    return dict(
        w1=lin(ks[0], d_in, (d_dim, d_in)),                   # h_encoder.weight
        b1=lin(ks[1], d_in, (d_dim,)),                        # h_encoder.bias
        bn_gamma=jnp.ones((d_dim,), jnp.float32),             # BatchNorm1d defaults
        bn_beta=jnp.zeros((d_dim,), jnp.float32),
        w2=lin(ks[2], d_dim + pre_topic_k,
               (2 * topic_k, d_dim + pre_topic_k)),           # shape_scale_encoder.weight
        b2=lin(ks[3], d_dim + pre_topic_k, (2 * topic_k,)),
        alpha=0.1 * jax.random.normal(ks[4], (vocab, emb_dim), jnp.float32),
        rho=0.1 * jax.random.normal(ks[5], (topic_k, emb_dim), jnp.float32),
    )


@jax.jit
def sawtooth_layer_forward(params, x, prior, bow, eps_u):
    B, _ = x.shape
    d_dim = params["w1"].shape[0]
    K = params["rho"].shape[0]
    V = params["alpha"].shape[0]
    S = eps_u.shape[0]

    # glue: transpose / split parameters into matmul-ready operands
    w1_t = params["w1"].T                                     # (d_in, d_dim)
    b1 = params["b1"].reshape(1, d_dim)
    gamma = params["bn_gamma"].reshape(1, d_dim)
    beta = params["bn_beta"].reshape(1, d_dim)
    w2_t = params["w2"].T                                     # (d_dim + K, 2K)
    w2h = w2_t[:d_dim, :]                                     # (d_dim, 2K)
    w2p = w2_t[d_dim:, :]                                     # (K, 2K)
    b2 = params["b2"].reshape(1, 2 * K)
    prior_t = prior.T                                         # (B, K)
    alpha_t = params["alpha"].T                               # (emb, V)

    s_tile = S_TILE if S % S_TILE == 0 else S
    n_s = S // s_tile

    # TODO(synk): torch.cuda.FloatTensor(...).uniform_() has no in-framework
    # equivalent; uniform draws are passed in (pltpu.prng_* could generate them
    # in-kernel, kept as an input for deterministic verification vs. reference).
    inputs = (x, w1_t, b1, gamma, beta, prior_t, w2h, w2p, b2,
              eps_u, params["rho"], alpha_t, bow)

    def resident(shape):
        nd = len(shape)
        return pl.BlockSpec(shape, lambda s, nd=nd: (0,) * nd)

    in_specs = [resident(a.shape) for a in inputs]
    in_specs[9] = pl.BlockSpec((s_tile, B, K), lambda s: (s, 0, 0))   # stream eps

    out_shape = (
        jax.ShapeDtypeStruct((1, 1), jnp.float32),            # sum(bow*log(pt) - pt)
        jax.ShapeDtypeStruct((1, 1), jnp.float32),            # sum(part1 + part2)
        jax.ShapeDtypeStruct((K, V), jnp.float32),            # phi.T  (lane-dense)
        jax.ShapeDtypeStruct((B, V), jnp.float32),            # phi_theta.T (lane-dense)
        jax.ShapeDtypeStruct((B, K), jnp.float32),            # theta
    )
    out_specs = tuple(resident(s.shape) for s in out_shape)

    # NOTE: at production vocab sizes, add a V-tile grid axis (two-pass softmax
    # over V) so phi/(phi@theta)/bow stay VMEM-bounded; at test shapes they fit.
    rec_p, kl_p, phi_t, phi_theta_t, theta = pl.pallas_call(
        sawtooth_kernel,
        out_shape=out_shape,
        grid=(n_s,),
        in_specs=in_specs,
        out_specs=out_specs,
        scratch_shapes=[pltpu.VMEM((B, K), jnp.float32)] * 4,
        compiler_params=pltpu.CompilerParams(
            dimension_semantics=("arbitrary",)),
    )(*inputs)

    batch = float(B)
    # Fold hoisted, input-only lgamma terms back into the losses (exact lax.lgamma).
    kl_loss = -(kl_p[0, 0]
                + (EULER_GAMMA + 1.0) * float(B * K)
                - jnp.sum(lax.lgamma(prior_t))) / batch
    rec_loss = (-rec_p[0, 0] + jnp.sum(lax.lgamma(bow + 1.0))) / batch
    # transpose back to the original module orientation: phi (V,K), phi_theta (V,B)
    return rec_loss, kl_loss, phi_t.T, phi_theta_t.T, theta


def reference_forward(params, x, prior, bow, eps_u):
    """Pure-JAX mirror of the PyTorch forward (is_top=False, is_bottom=True)."""
    K = params["rho"].shape[0]
    log_max = lambda v: jnp.log(jnp.maximum(v, REAL_MIN))

    h = x @ params["w1"].T + params["b1"]
    mu = h.mean(0)
    var = ((h - mu) ** 2).mean(0)
    hidden = jax.nn.relu(params["bn_gamma"] * (h - mu) / jnp.sqrt(var + BN_EPS)
                         + params["bn_beta"])
    hidden = jnp.concatenate([hidden, prior.T], axis=1)
    z = hidden @ params["w2"].T + params["b2"]
    k_temp, l_temp = z[:, :K], z[:, K:]
    k = jnp.clip(jax.nn.softplus(k_temp), WEI_SHAPE_MIN, WEI_SHAPE_MAX)
    l = jnp.clip(jax.nn.softplus(l_temp) / jnp.exp(lax.lgamma(1.0 + 1.0 / k)),
                 REAL_MIN, 9999.0)
    theta_s = l[None] * jnp.power(-log_max(1.0 - eps_u), (1.0 / k)[None])
    theta = jnp.clip(theta_s, REAL_MIN, THETA_MAX).mean(0)
    w = params["alpha"] @ params["rho"].T
    phi = jax.nn.softmax(w + REAL_MIN, axis=0)
    phi_theta = phi @ theta.T
    p1 = prior.T * log_max(l) - EULER_GAMMA * prior.T / k + log_max(1.0 / k)
    p2 = -1.0 * l * jnp.exp(lax.lgamma(1.0 + 1.0 / k))
    p3 = EULER_GAMMA + 1.0 + prior.T * log_max(1.0) - lax.lgamma(prior.T)
    kl = -(p1 + p2 + p3).sum() / x.shape[0]
    bow_t = bow.T
    lik = bow_t * log_max(phi_theta) - phi_theta - lax.lgamma(bow_t + 1.0)
    rec = -lik.sum() / x.shape[0]
    return rec, kl, phi, phi_theta, theta


if __name__ == "__main__":
    B, D_IN, D_DIM = 8, 256, 128
    TOPIC_K = PRE_TOPIC_K = 128       # must match for the KL broadcast, as in the model
    EMB, VOCAB = 128, 256

    key = jax.random.PRNGKey(0)
    k_param, k_x, k_prior, k_bow, k_eps = jax.random.split(key, 5)
    params = init_params(k_param, D_IN, D_DIM, TOPIC_K, PRE_TOPIC_K, EMB, VOCAB)
    x = jax.random.normal(k_x, (B, D_IN), jnp.float32)
    prior = jax.random.uniform(k_prior, (PRE_TOPIC_K, B), jnp.float32, 0.5, 2.0)
    bow = jnp.floor(jax.random.uniform(k_bow, (B, VOCAB), jnp.float32, 0.0, 5.0))
    # uniform(0,1) samples for reparameterize (replaces torch.cuda.FloatTensor.uniform_)
    eps_u = jax.random.uniform(k_eps, (SAMPLE_NUM, B, TOPIC_K), jnp.float32, 0.0, 1.0)

    rec, kl, phi, phi_theta, theta = sawtooth_layer_forward(params, x, prior, bow, eps_u)
    jax.block_until_ready((rec, kl, phi, phi_theta, theta))

    rec_r, kl_r, phi_r, pt_r, th_r = reference_forward(params, x, prior, bow, eps_u)
    np.testing.assert_allclose(np.asarray(rec), np.asarray(rec_r), rtol=5e-3, atol=1e-2)
    np.testing.assert_allclose(np.asarray(kl), np.asarray(kl_r), rtol=5e-3, atol=1e-2)
    np.testing.assert_allclose(np.asarray(phi), np.asarray(phi_r), rtol=5e-3, atol=1e-5)
    np.testing.assert_allclose(np.asarray(phi_theta), np.asarray(pt_r), rtol=5e-3, atol=1e-4)
    np.testing.assert_allclose(np.asarray(theta), np.asarray(th_r), rtol=5e-3, atol=1e-4)
    print("KERNEL_OK")
</pallas_src>

<mosaic_0001>
module attributes {stable_mosaic.version = 11 : i64} {
  func.func @sawtooth_kernel(%arg0: i32, %arg1: memref<8x256xf32, #tpu.memory_space<vmem>>, %arg2: memref<256x128xf32, #tpu.memory_space<vmem>>, %arg3: memref<1x128xf32, #tpu.memory_space<vmem>>, %arg4: memref<1x128xf32, #tpu.memory_space<vmem>>, %arg5: memref<1x128xf32, #tpu.memory_space<vmem>>, %arg6: memref<8x128xf32, #tpu.memory_space<vmem>>, %arg7: memref<128x256xf32, #tpu.memory_space<vmem>>, %arg8: memref<128x256xf32, #tpu.memory_space<vmem>>, %arg9: memref<1x256xf32, #tpu.memory_space<vmem>>, %arg10: memref<10x8x128xf32, #tpu.memory_space<vmem>>, %arg11: memref<128x128xf32, #tpu.memory_space<vmem>>, %arg12: memref<128x256xf32, #tpu.memory_space<vmem>>, %arg13: memref<8x256xf32, #tpu.memory_space<vmem>>, %arg14: memref<1x1xf32, #tpu.memory_space<vmem>>, %arg15: memref<1x1xf32, #tpu.memory_space<vmem>>, %arg16: memref<128x256xf32, #tpu.memory_space<vmem>>, %arg17: memref<8x256xf32, #tpu.memory_space<vmem>>, %arg18: memref<8x128xf32, #tpu.memory_space<vmem>>, %arg19: memref<8x128xf32, #tpu.memory_space<vmem>>, %arg20: memref<8x128xf32, #tpu.memory_space<vmem>>, %arg21: memref<8x128xf32, #tpu.memory_space<vmem>>, %arg22: memref<8x128xf32, #tpu.memory_space<vmem>>) attributes {dimension_semantics = [#tpu.dimension_semantics<arbitrary>], iteration_bounds = array<i64: 5>, scalar_prefetch = 0 : i64, scratch_operands = 4 : i64, tpu.core_type = #tpu.core_type<tc>, window_params = [{pipeline_mode = #tpu.pipeline_mode<synchronous>, transform_indices = @transform_0, window_bounds = array<i64: 8, 256>}, {pipeline_mode = #tpu.pipeline_mode<synchronous>, transform_indices = @transform_1, window_bounds = array<i64: 256, 128>}, {pipeline_mode = #tpu.pipeline_mode<synchronous>, transform_indices = @transform_2, window_bounds = array<i64: 1, 128>}, {pipeline_mode = #tpu.pipeline_mode<synchronous>, transform_indices = @transform_3, window_bounds = array<i64: 1, 128>}, {pipeline_mode = #tpu.pipeline_mode<synchronous>, transform_indices = @transform_4, window_bounds = array<i64: 1, 128>}, {pipeline_mode = #tpu.pipeline_mode<synchronous>, transform_indices = @transform_5, window_bounds = array<i64: 8, 128>}, {pipeline_mode = #tpu.pipeline_mode<synchronous>, transform_indices = @transform_6, window_bounds = array<i64: 128, 256>}, {pipeline_mode = #tpu.pipeline_mode<synchronous>, transform_indices = @transform_7, window_bounds = array<i64: 128, 256>}, {pipeline_mode = #tpu.pipeline_mode<synchronous>, transform_indices = @transform_8, window_bounds = array<i64: 1, 256>}, {transform_indices = @transform_9, window_bounds = array<i64: 10, 8, 128>}, {pipeline_mode = #tpu.pipeline_mode<synchronous>, transform_indices = @transform_10, window_bounds = array<i64: 128, 128>}, {pipeline_mode = #tpu.pipeline_mode<synchronous>, transform_indices = @transform_11, window_bounds = array<i64: 128, 256>}, {pipeline_mode = #tpu.pipeline_mode<synchronous>, transform_indices = @transform_12, window_bounds = array<i64: 8, 256>}, {pipeline_mode = #tpu.pipeline_mode<synchronous>, transform_indices = @transform_13, window_bounds = array<i64: 1, 1>}, {pipeline_mode = #tpu.pipeline_mode<synchronous>, transform_indices = @transform_14, window_bounds = array<i64: 1, 1>}, {pipeline_mode = #tpu.pipeline_mode<synchronous>, transform_indices = @transform_15, window_bounds = array<i64: 128, 256>}, {pipeline_mode = #tpu.pipeline_mode<synchronous>, transform_indices = @transform_16, window_bounds = array<i64: 8, 256>}, {pipeline_mode = #tpu.pipeline_mode<synchronous>, transform_indices = @transform_17, window_bounds = array<i64: 8, 128>}]} {
    %c0_i32 = arith.constant 0 : i32
    %0 = arith.cmpi eq, %arg0, %c0_i32 : i32
    %1 = arith.extui %0 : i1 to i32
    %c0_i32_0 = arith.constant 0 : i32
    %2 = arith.cmpi ne, %1, %c0_i32_0 : i32
    scf.if %2 {
      %c0_20 = arith.constant 0 : index
      %c0_21 = arith.constant 0 : index
      %38 = vector.load %arg1[%c0_20, %c0_21] : memref<8x256xf32, #tpu.memory_space<vmem>>, vector<8x256xf32>
      %c0_22 = arith.constant 0 : index
      %c0_23 = arith.constant 0 : index
      %39 = vector.load %arg2[%c0_22, %c0_23] : memref<256x128xf32, #tpu.memory_space<vmem>>, vector<256x128xf32>
      %cst_24 = arith.constant dense<0.000000e+00> : vector<8x128xf32>
      %40 = tpu.matmul %38, %39, %cst_24 {dimension_numbers = #tpu.dot_dimension_numbers<[1], [0], [0], [1], [0, 0, 1, 1], [], []>} : vector<8x256xf32>, vector<256x128xf32>, vector<8x128xf32> -> vector<8x128xf32>
      %c0_25 = arith.constant 0 : index
      %c0_26 = arith.constant 0 : index
      %41 = vector.load %arg3[%c0_25, %c0_26] : memref<1x128xf32, #tpu.memory_space<vmem>>, vector<1x128xf32>
      %42 = vector.broadcast %41 : vector<1x128xf32> to vector<8x128xf32>
      %43 = arith.addf %40, %42 : vector<8x128xf32>
      %cst_27 = arith.constant dense<0.000000e+00> : vector<128xf32>
      %44 = vector.multi_reduction <add>, %43, %cst_27 [0] : vector<8x128xf32> to vector<128xf32>
      %45 = vector.shape_cast %44 : vector<128xf32> to vector<1x128xf32>
      %cst_28 = arith.constant 8.000000e+00 : f32
      %46 = vector.broadcast %cst_28 : f32 to vector<1x128xf32>
      %47 = arith.divf %45, %46 : vector<1x128xf32>
      %48 = vector.broadcast %47 : vector<1x128xf32> to vector<8x128xf32>
      %49 = arith.subf %43, %48 : vector<8x128xf32>
      %50 = arith.mulf %49, %49 : vector<8x128xf32>
      %cst_29 = arith.constant dense<0.000000e+00> : vector<128xf32>
      %51 = vector.multi_reduction <add>, %50, %cst_29 [0] : vector<8x128xf32> to vector<128xf32>
      %52 = vector.shape_cast %51 : vector<128xf32> to vector<1x128xf32>
      %cst_30 = arith.constant 8.000000e+00 : f32
      %53 = vector.broadcast %cst_30 : f32 to vector<1x128xf32>
      %54 = arith.divf %52, %53 : vector<1x128xf32>
      %55 = vector.broadcast %47 : vector<1x128xf32> to vector<8x128xf32>
      %56 = arith.subf %43, %55 : vector<8x128xf32>
      %cst_31 = arith.constant 9.99999974E-6 : f32
      %57 = vector.broadcast %cst_31 : f32 to vector<1x128xf32>
      %58 = arith.addf %54, %57 : vector<1x128xf32>
      %59 = math.rsqrt %58 : vector<1x128xf32>
      %60 = vector.broadcast %59 : vector<1x128xf32> to vector<8x128xf32>
      %61 = arith.mulf %56, %60 : vector<8x128xf32>
      %c0_32 = arith.constant 0 : index
      %c0_33 = arith.constant 0 : index
      %62 = vector.load %arg4[%c0_32, %c0_33] : memref<1x128xf32, #tpu.memory_space<vmem>>, vector<1x128xf32>
      %63 = vector.broadcast %62 : vector<1x128xf32> to vector<8x128xf32>
      %64 = arith.mulf %63, %61 : vector<8x128xf32>
      %c0_34 = arith.constant 0 : index
      %c0_35 = arith.constant 0 : index
      %65 = vector.load %arg5[%c0_34, %c0_35] : memref<1x128xf32, #tpu.memory_space<vmem>>, vector<1x128xf32>
      %66 = vector.broadcast %65 : vector<1x128xf32> to vector<8x128xf32>
      %67 = arith.addf %64, %66 : vector<8x128xf32>
      %cst_36 = arith.constant 0.000000e+00 : f32
      %68 = vector.broadcast %cst_36 : f32 to vector<8x128xf32>
      %69 = arith.maximumf %67, %68 : vector<8x128xf32>
      %c0_37 = arith.constant 0 : index
      %c0_38 = arith.constant 0 : index
      %70 = vector.load %arg7[%c0_37, %c0_38] : memref<128x256xf32, #tpu.memory_space<vmem>>, vector<128x256xf32>
      %cst_39 = arith.constant dense<0.000000e+00> : vector<8x256xf32>
      %71 = tpu.matmul %69, %70, %cst_39 {dimension_numbers = #tpu.dot_dimension_numbers<[1], [0], [0], [1], [0, 0, 1, 1], [], []>} : vector<8x128xf32>, vector<128x256xf32>, vector<8x256xf32> -> vector<8x256xf32>
      %c0_40 = arith.constant 0 : index
      %c0_41 = arith.constant 0 : index
      %72 = vector.load %arg6[%c0_40, %c0_41] : memref<8x128xf32, #tpu.memory_space<vmem>>, vector<8x128xf32>
      %c0_42 = arith.constant 0 : index
      %c0_43 = arith.constant 0 : index
      %73 = vector.load %arg8[%c0_42, %c0_43] : memref<128x256xf32, #tpu.memory_space<vmem>>, vector<128x256xf32>
      %cst_44 = arith.constant dense<0.000000e+00> : vector<8x256xf32>
      %74 = tpu.matmul %72, %73, %cst_44 {dimension_numbers = #tpu.dot_dimension_numbers<[1], [0], [0], [1], [0, 0, 1, 1], [], []>} : vector<8x128xf32>, vector<128x256xf32>, vector<8x256xf32> -> vector<8x256xf32>
      %75 = arith.addf %71, %74 : vector<8x256xf32>
      %c0_45 = arith.constant 0 : index
      %c0_46 = arith.constant 0 : index
      %76 = vector.load %arg9[%c0_45, %c0_46] : memref<1x256xf32, #tpu.memory_space<vmem>>, vector<1x256xf32>
      %77 = vector.broadcast %76 : vector<1x256xf32> to vector<8x256xf32>
      %78 = arith.addf %75, %77 : vector<8x256xf32>
      %79 = vector.extract_strided_slice %78 {offsets = [0, 0], sizes = [8, 128], strides = [1, 1]} : vector<8x256xf32> to vector<8x128xf32>
      %cst_47 = arith.constant 2.000000e+01 : f32
      %80 = vector.broadcast %cst_47 : f32 to vector<8x128xf32>
      %81 = arith.cmpf ogt, %79, %80 : vector<8x128xf32>
      %cst_48 = arith.constant 2.000000e+01 : f32
      %82 = vector.broadcast %cst_48 : f32 to vector<8x128xf32>
      %83 = arith.minimumf %79, %82 : vector<8x128xf32>
      %84 = math.exp %83 : vector<8x128xf32>
      %cst_49 = arith.constant 1.000000e+00 : f32
      %85 = vector.broadcast %cst_49 : f32 to vector<8x128xf32>
      %86 = arith.addf %85, %84 : vector<8x128xf32>
      %87 = math.log %86 : vector<8x128xf32>
      %88 = arith.select %81, %79, %87 : vector<8x128xi1>, vector<8x128xf32>
      %cst_50 = arith.constant 1.000000e-01 : f32
      %cst_51 = arith.constant 1.000000e+02 : f32
      %89 = vector.broadcast %cst_50 : f32 to vector<8x128xf32>
      %90 = arith.maximumf %89, %88 : vector<8x128xf32>
      %91 = vector.broadcast %cst_51 : f32 to vector<8x128xf32>
      %92 = arith.minimumf %91, %90 : vector<8x128xf32>
      %cst_52 = arith.constant 1.000000e+00 : f32
      %93 = vector.broadcast %cst_52 : f32 to vector<8x128xf32>
      %94 = arith.divf %93, %92 : vector<8x128xf32>
      %cst_53 = arith.constant 1.000000e+00 : f32
      %95 = vector.broadcast %cst_53 : f32 to vector<8x128xf32>
      %96 = arith.addf %95, %94 : vector<8x128xf32>
      %cst_54 = arith.constant 1.000000e+00 : f32
      %97 = vector.broadcast %cst_54 : f32 to vector<8x128xf32>
      %98 = arith.subf %96, %97 : vector<8x128xf32>
      %cst_55 = arith.constant 1.000000e+00 : f32
      %99 = vector.broadcast %cst_55 : f32 to vector<8x128xf32>
      %cst_56 = arith.constant 1.000000e+00 : f32
      %100 = vector.broadcast %cst_56 : f32 to vector<8x128xf32>
      %101 = arith.addf %98, %100 : vector<8x128xf32>
      %cst_57 = arith.constant 676.520386 : f32
      %102 = vector.broadcast %cst_57 : f32 to vector<8x128xf32>
      %103 = arith.divf %102, %101 : vector<8x128xf32>
      %104 = arith.addf %99, %103 : vector<8x128xf32>
      %cst_58 = arith.constant 2.000000e+00 : f32
      %105 = vector.broadcast %cst_58 : f32 to vector<8x128xf32>
      %106 = arith.addf %98, %105 : vector<8x128xf32>
      %cst_59 = arith.constant -1259.13916 : f32
      %107 = vector.broadcast %cst_59 : f32 to vector<8x128xf32>
      %108 = arith.divf %107, %106 : vector<8x128xf32>
      %109 = arith.addf %104, %108 : vector<8x128xf32>
      %cst_60 = arith.constant 3.000000e+00 : f32
      %110 = vector.broadcast %cst_60 : f32 to vector<8x128xf32>
      %111 = arith.addf %98, %110 : vector<8x128xf32>
      %cst_61 = arith.constant 771.323425 : f32
      %112 = vector.broadcast %cst_61 : f32 to vector<8x128xf32>
      %113 = arith.divf %112, %111 : vector<8x128xf32>
      %114 = arith.addf %109, %113 : vector<8x128xf32>
      %cst_62 = arith.constant 4.000000e+00 : f32
      %115 = vector.broadcast %cst_62 : f32 to vector<8x128xf32>
      %116 = arith.addf %98, %115 : vector<8x128xf32>
      %cst_63 = arith.constant -176.615036 : f32
      %117 = vector.broadcast %cst_63 : f32 to vector<8x128xf32>
      %118 = arith.divf %117, %116 : vector<8x128xf32>
      %119 = arith.addf %114, %118 : vector<8x128xf32>
      %cst_64 = arith.constant 5.000000e+00 : f32
      %120 = vector.broadcast %cst_64 : f32 to vector<8x128xf32>
      %121 = arith.addf %98, %120 : vector<8x128xf32>
      %cst_65 = arith.constant 12.5073433 : f32
      %122 = vector.broadcast %cst_65 : f32 to vector<8x128xf32>
      %123 = arith.divf %122, %121 : vector<8x128xf32>
      %124 = arith.addf %119, %123 : vector<8x128xf32>
      %cst_66 = arith.constant 6.000000e+00 : f32
      %125 = vector.broadcast %cst_66 : f32 to vector<8x128xf32>
      %126 = arith.addf %98, %125 : vector<8x128xf32>
      %cst_67 = arith.constant -0.138571098 : f32
      %127 = vector.broadcast %cst_67 : f32 to vector<8x128xf32>
      %128 = arith.divf %127, %126 : vector<8x128xf32>
      %129 = arith.addf %124, %128 : vector<8x128xf32>
      %cst_68 = arith.constant 7.000000e+00 : f32
      %130 = vector.broadcast %cst_68 : f32 to vector<8x128xf32>
      %131 = arith.addf %98, %130 : vector<8x128xf32>
      %cst_69 = arith.constant 9.98436917E-6 : f32
      %132 = vector.broadcast %cst_69 : f32 to vector<8x128xf32>
      %133 = arith.divf %132, %131 : vector<8x128xf32>
      %134 = arith.addf %129, %133 : vector<8x128xf32>
      %cst_70 = arith.constant 8.000000e+00 : f32
      %135 = vector.broadcast %cst_70 : f32 to vector<8x128xf32>
      %136 = arith.addf %98, %135 : vector<8x128xf32>
      %cst_71 = arith.constant 1.50563267E-7 : f32
      %137 = vector.broadcast %cst_71 : f32 to vector<8x128xf32>
      %138 = arith.divf %137, %136 : vector<8x128xf32>
      %139 = arith.addf %134, %138 : vector<8x128xf32>
      %cst_72 = arith.constant 7.000000e+00 : f32
      %140 = vector.broadcast %cst_72 : f32 to vector<8x128xf32>
      %141 = arith.addf %98, %140 : vector<8x128xf32>
      %cst_73 = arith.constant 5.000000e-01 : f32
      %142 = vector.broadcast %cst_73 : f32 to vector<8x128xf32>
      %143 = arith.addf %141, %142 : vector<8x128xf32>
      %cst_74 = arith.constant 5.000000e-01 : f32
      %144 = vector.broadcast %cst_74 : f32 to vector<8x128xf32>
      %145 = arith.addf %98, %144 : vector<8x128xf32>
      %146 = math.log %143 : vector<8x128xf32>
      %147 = arith.mulf %145, %146 : vector<8x128xf32>
      %cst_75 = arith.constant 0.918938517 : f32
      %148 = vector.broadcast %cst_75 : f32 to vector<8x128xf32>
      %149 = arith.addf %148, %147 : vector<8x128xf32>
      %150 = arith.subf %149, %143 : vector<8x128xf32>
      %151 = math.log %139 : vector<8x128xf32>
      %152 = arith.addf %150, %151 : vector<8x128xf32>
      %153 = math.exp %152 : vector<8x128xf32>
      %154 = vector.extract_strided_slice %78 {offsets = [0, 128], sizes = [8, 128], strides = [1, 1]} : vector<8x256xf32> to vector<8x128xf32>
      %cst_76 = arith.constant 2.000000e+01 : f32
      %155 = vector.broadcast %cst_76 : f32 to vector<8x128xf32>
      %156 = arith.cmpf ogt, %154, %155 : vector<8x128xf32>
      %cst_77 = arith.constant 2.000000e+01 : f32
      %157 = vector.broadcast %cst_77 : f32 to vector<8x128xf32>
      %158 = arith.minimumf %154, %157 : vector<8x128xf32>
      %159 = math.exp %158 : vector<8x128xf32>
      %cst_78 = arith.constant 1.000000e+00 : f32
      %160 = vector.broadcast %cst_78 : f32 to vector<8x128xf32>
      %161 = arith.addf %160, %159 : vector<8x128xf32>
      %162 = math.log %161 : vector<8x128xf32>
      %163 = arith.select %156, %154, %162 : vector<8x128xi1>, vector<8x128xf32>
      %164 = arith.divf %163, %153 : vector<8x128xf32>
      %cst_79 = arith.constant 1.000000e-30 : f32
      %cst_80 = arith.constant 9.999000e+03 : f32
      %165 = vector.broadcast %cst_79 : f32 to vector<8x128xf32>
      %166 = arith.maximumf %165, %164 : vector<8x128xf32>
      %167 = vector.broadcast %cst_80 : f32 to vector<8x128xf32>
      %168 = arith.minimumf %167, %166 : vector<8x128xf32>
      %c0_81 = arith.constant 0 : index
      %c0_82 = arith.constant 0 : index
      %169 = vector.load %arg19[%c0_81, %c0_82] : memref<8x128xf32, #tpu.memory_space<vmem>>, vector<8x128xf32>
      tpu.vector_store %arg19[%c0_81, %c0_82], %94 {strides = array<i32>} : memref<8x128xf32, #tpu.memory_space<vmem>>, vector<8x128xf32>,
      %c0_83 = arith.constant 0 : index
      %c0_84 = arith.constant 0 : index
      %170 = vector.load %arg20[%c0_83, %c0_84] : memref<8x128xf32, #tpu.memory_space<vmem>>, vector<8x128xf32>
      tpu.vector_store %arg20[%c0_83, %c0_84], %168 {strides = array<i32>} : memref<8x128xf32, #tpu.memory_space<vmem>>, vector<8x128xf32>,
      %c0_85 = arith.constant 0 : index
      %c0_86 = arith.constant 0 : index
      %171 = vector.load %arg21[%c0_85, %c0_86] : memref<8x128xf32, #tpu.memory_space<vmem>>, vector<8x128xf32>
      tpu.vector_store %arg21[%c0_85, %c0_86], %153 {strides = array<i32>} : memref<8x128xf32, #tpu.memory_space<vmem>>, vector<8x128xf32>,
      %cst_87 = arith.constant 0.000000e+00 : f32
      %172 = vector.broadcast %cst_87 : f32 to vector<8x128xf32>
      %c0_88 = arith.constant 0 : index
      %c0_89 = arith.constant 0 : index
      %173 = vector.load %arg22[%c0_88, %c0_89] : memref<8x128xf32, #tpu.memory_space<vmem>>, vector<8x128xf32>
      tpu.vector_store %arg22[%c0_88, %c0_89], %172 {strides = array<i32>} : memref<8x128xf32, #tpu.memory_space<vmem>>, vector<8x128xf32>,
    } else {
    }
    %c0 = arith.constant 0 : index
    %c0_1 = arith.constant 0 : index
    %3 = vector.load %arg19[%c0, %c0_1] : memref<8x128xf32, #tpu.memory_space<vmem>>, vector<8x128xf32>
    %c0_2 = arith.constant 0 : index
    %c0_3 = arith.constant 0 : index
    %4 = vector.load %arg20[%c0_2, %c0_3] : memref<8x128xf32, #tpu.memory_space<vmem>>, vector<8x128xf32>
    %c0_4 = arith.constant 0 : index
    %c0_5 = arith.constant 0 : index
    %c0_6 = arith.constant 0 : index
    %5 = vector.load %arg10[%c0_4, %c0_5, %c0_6] : memref<10x8x128xf32, #tpu.memory_space<vmem>>, vector<10x8x128xf32>
    %cst = arith.constant 1.000000e+00 : f32
    %6 = vector.broadcast %cst : f32 to vector<10x8x128xf32>
    %7 = arith.subf %6, %5 : vector<10x8x128xf32>
    %cst_7 = arith.constant 1.000000e-30 : f32
    %8 = vector.broadcast %cst_7 : f32 to vector<10x8x128xf32>
    %9 = arith.maximumf %7, %8 : vector<10x8x128xf32>
    %10 = math.log %9 : vector<10x8x128xf32>
    %cst_8 = arith.constant 0.000000e+00 : f32
    %11 = vector.broadcast %cst_8 : f32 to vector<10x8x128xf32>
    %12 = arith.subf %11, %10 : vector<10x8x128xf32>
    %cst_9 = arith.constant 1.000000e-30 : f32
    %13 = vector.broadcast %cst_9 : f32 to vector<10x8x128xf32>
    %14 = arith.maximumf %12, %13 : vector<10x8x128xf32>
    %15 = math.log %14 : vector<10x8x128xf32>
    %cst_10 = arith.constant 0.000000e+00 : f32
    %16 = vector.broadcast %cst_10 : f32 to vector<10x8x128xf32>
    %17 = arith.cmpf ogt, %12, %16 : vector<10x8x128xf32>
    %18 = vector.shape_cast %3 : vector<8x128xf32> to vector<1x8x128xf32>
    %19 = vector.broadcast %18 : vector<1x8x128xf32> to vector<10x8x128xf32>
    %20 = arith.mulf %19, %15 : vector<10x8x128xf32>
    %21 = math.exp %20 : vector<10x8x128xf32>
    %cst_11 = arith.constant 0.000000e+00 : f32
    %22 = vector.broadcast %cst_11 : f32 to vector<10x8x128xf32>
    %23 = arith.select %17, %21, %22 : vector<10x8x128xi1>, vector<10x8x128xf32>
    %24 = vector.shape_cast %4 : vector<8x128xf32> to vector<1x8x128xf32>
    %25 = vector.broadcast %24 : vector<1x8x128xf32> to vector<10x8x128xf32>
    %26 = arith.mulf %25, %23 : vector<10x8x128xf32>
    %cst_12 = arith.constant 1.000000e-30 : f32
    %cst_13 = arith.constant 1.000000e+03 : f32
    %27 = vector.broadcast %cst_12 : f32 to vector<10x8x128xf32>
    %28 = arith.maximumf %27, %26 : vector<10x8x128xf32>
    %29 = vector.broadcast %cst_13 : f32 to vector<10x8x128xf32>
    %30 = arith.minimumf %29, %28 : vector<10x8x128xf32>
    %c0_14 = arith.constant 0 : index
    %c0_15 = arith.constant 0 : index
    %31 = vector.load %arg22[%c0_14, %c0_15] : memref<8x128xf32, #tpu.memory_space<vmem>>, vector<8x128xf32>
    %cst_16 = arith.constant dense<0.000000e+00> : vector<8x128xf32>
    %32 = vector.multi_reduction <add>, %30, %cst_16 [0] : vector<10x8x128xf32> to vector<8x128xf32>
    %33 = arith.addf %31, %32 : vector<8x128xf32>
    %c0_17 = arith.constant 0 : index
    %c0_18 = arith.constant 0 : index
    %34 = vector.load %arg22[%c0_17, %c0_18] : memref<8x128xf32, #tpu.memory_space<vmem>>, vector<8x128xf32>
    tpu.vector_store %arg22[%c0_17, %c0_18], %33 {strides = array<i32>} : memref<8x128xf32, #tpu.memory_space<vmem>>, vector<8x128xf32>,
    %c4_i32 = arith.constant 4 : i32
    %35 = arith.cmpi eq, %arg0, %c4_i32 : i32
    %36 = arith.extui %35 : i1 to i32
    %c0_i32_19 = arith.constant 0 : i32
    %37 = arith.cmpi ne, %36, %c0_i32_19 : i32
    scf.if %37 {
      %c0_20 = arith.constant 0 : index
      %c0_21 = arith.constant 0 : index
      %38 = vector.load %arg22[%c0_20, %c0_21] : memref<8x128xf32, #tpu.memory_space<vmem>>, vector<8x128xf32>
      %cst_22 = arith.constant 2.000000e-02 : f32
      %39 = vector.broadcast %cst_22 : f32 to vector<8x128xf32>
      %40 = arith.mulf %38, %39 : vector<8x128xf32>
      %c0_23 = arith.constant 0 : index
      %c0_24 = arith.constant 0 : index
      %41 = vector.load %arg18[%c0_23, %c0_24] : memref<8x128xf32, #tpu.memory_space<vmem>>, vector<8x128xf32>
      tpu.vector_store %arg18[%c0_23, %c0_24], %40 {strides = array<i32>} : memref<8x128xf32, #tpu.memory_space<vmem>>, vector<8x128xf32>,
      %c0_25 = arith.constant 0 : index
      %c0_26 = arith.constant 0 : index
      %42 = vector.load %arg11[%c0_25, %c0_26] : memref<128x128xf32, #tpu.memory_space<vmem>>, vector<128x128xf32>
      %c0_27 = arith.constant 0 : index
      %c0_28 = arith.constant 0 : index
      %43 = vector.load %arg12[%c0_27, %c0_28] : memref<128x256xf32, #tpu.memory_space<vmem>>, vector<128x256xf32>
      %cst_29 = arith.constant dense<0.000000e+00> : vector<128x256xf32>
      %44 = tpu.matmul %42, %43, %cst_29 {dimension_numbers = #tpu.dot_dimension_numbers<[1], [0], [0], [1], [0, 0, 1, 1], [], []>} : vector<128x128xf32>, vector<128x256xf32>, vector<128x256xf32> -> vector<128x256xf32>
      %cst_30 = arith.constant 1.000000e-30 : f32
      %45 = vector.broadcast %cst_30 : f32 to vector<128x256xf32>
      %46 = arith.addf %44, %45 : vector<128x256xf32>
      %cst_31 = arith.constant dense<0xFF800000> : vector<128xf32>
      %47 = vector.multi_reduction <maximumf>, %46, %cst_31 [1] : vector<128x256xf32> to vector<128xf32>
      %48 = vector.shape_cast %47 : vector<128xf32> to vector<128x1xf32>
      %49 = vector.broadcast %48 : vector<128x1xf32> to vector<128x256xf32>
      %50 = arith.subf %46, %49 : vector<128x256xf32>
      %51 = math.exp %50 : vector<128x256xf32>
      %cst_32 = arith.constant dense<0.000000e+00> : vector<128xf32>
      %52 = vector.multi_reduction <add>, %51, %cst_32 [1] : vector<128x256xf32> to vector<128xf32>
      %53 = vector.shape_cast %52 : vector<128xf32> to vector<128x1xf32>
      %54 = tpu.reciprocal %53 {approx = true} : vector<128x1xf32> -> vector<128x1xf32>
      %55 = vector.broadcast %54 : vector<128x1xf32> to vector<128x256xf32>
      %56 = arith.mulf %51, %55 : vector<128x256xf32>
      %cst_33 = arith.constant dense<0.000000e+00> : vector<8x256xf32>
      %57 = tpu.matmul %40, %56, %cst_33 {dimension_numbers = #tpu.dot_dimension_numbers<[1], [0], [0], [1], [0, 0, 1, 1], [], []>} : vector<8x128xf32>, vector<128x256xf32>, vector<8x256xf32> -> vector<8x256xf32>
      %c0_34 = arith.constant 0 : index
      %c0_35 = arith.constant 0 : index
      %58 = vector.load %arg16[%c0_34, %c0_35] : memref<128x256xf32, #tpu.memory_space<vmem>>, vector<128x256xf32>
      tpu.vector_store %arg16[%c0_34, %c0_35], %56 {strides = array<i32>} : memref<128x256xf32, #tpu.memory_space<vmem>>, vector<128x256xf32>,
      %c0_36 = arith.constant 0 : index
      %c0_37 = arith.constant 0 : index
      %59 = vector.load %arg17[%c0_36, %c0_37] : memref<8x256xf32, #tpu.memory_space<vmem>>, vector<8x256xf32>
      tpu.vector_store %arg17[%c0_36, %c0_37], %57 {strides = array<i32>} : memref<8x256xf32, #tpu.memory_space<vmem>>, vector<8x256xf32>,
      %c0_38 = arith.constant 0 : index
      %c0_39 = arith.constant 0 : index
      %60 = vector.load %arg6[%c0_38, %c0_39] : memref<8x128xf32, #tpu.memory_space<vmem>>, vector<8x128xf32>
      %cst_40 = arith.constant 1.000000e-30 : f32
      %61 = vector.broadcast %cst_40 : f32 to vector<8x128xf32>
      %62 = arith.maximumf %4, %61 : vector<8x128xf32>
      %63 = math.log %62 : vector<8x128xf32>
      %64 = arith.mulf %60, %63 : vector<8x128xf32>
      %cst_41 = arith.constant 5.772000e-01 : f32
      %65 = vector.broadcast %cst_41 : f32 to vector<8x128xf32>
      %66 = arith.mulf %65, %60 : vector<8x128xf32>
      %67 = arith.mulf %66, %3 : vector<8x128xf32>
      %68 = arith.subf %64, %67 : vector<8x128xf32>
      %cst_42 = arith.constant 1.000000e-30 : f32
      %69 = vector.broadcast %cst_42 : f32 to vector<8x128xf32>
      %70 = arith.maximumf %3, %69 : vector<8x128xf32>
      %71 = math.log %70 : vector<8x128xf32>
      %72 = arith.addf %68, %71 : vector<8x128xf32>
      %c0_43 = arith.constant 0 : index
      %c0_44 = arith.constant 0 : index
      %73 = vector.load %arg21[%c0_43, %c0_44] : memref<8x128xf32, #tpu.memory_space<vmem>>, vector<8x128xf32>
      %74 = arith.mulf %4, %73 : vector<8x128xf32>
      %75 = arith.subf %72, %74 : vector<8x128xf32>
      %cst_45 = arith.constant dense<0.000000e+00> : vector<8xf32>
      %76 = vector.multi_reduction <add>, %75, %cst_45 [1] : vector<8x128xf32> to vector<8xf32>
      %77 = vector.shape_cast %76 : vector<8xf32> to vector<8x1xf32>
      %cst_46 = arith.constant dense<0.000000e+00> : vector<1xf32>
      %78 = vector.multi_reduction <add>, %77, %cst_46 [0] : vector<8x1xf32> to vector<1xf32>
      %79 = vector.shape_cast %78 : vector<1xf32> to vector<1x1xf32>
      %c0_47 = arith.constant 0 : index
      %c0_48 = arith.constant 0 : index
      %80 = vector.load %arg15[%c0_47, %c0_48] : memref<1x1xf32, #tpu.memory_space<vmem>>, vector<1x1xf32>
      tpu.vector_store %arg15[%c0_47, %c0_48], %79 {strides = array<i32>} : memref<1x1xf32, #tpu.memory_space<vmem>>, vector<1x1xf32>,
      %c0_49 = arith.constant 0 : index
      %c0_50 = arith.constant 0 : index
      %81 = vector.load %arg13[%c0_49, %c0_50] : memref<8x256xf32, #tpu.memory_space<vmem>>, vector<8x256xf32>
      %cst_51 = arith.constant 1.000000e-30 : f32
      %82 = vector.broadcast %cst_51 : f32 to vector<8x256xf32>
      %83 = arith.maximumf %57, %82 : vector<8x256xf32>
      %84 = math.log %83 : vector<8x256xf32>
      %85 = arith.mulf %81, %84 : vector<8x256xf32>
      %86 = arith.subf %85, %57 : vector<8x256xf32>
      %cst_52 = arith.constant dense<0.000000e+00> : vector<8xf32>
      %87 = vector.multi_reduction <add>, %86, %cst_52 [1] : vector<8x256xf32> to vector<8xf32>
      %88 = vector.shape_cast %87 : vector<8xf32> to vector<8x1xf32>
      %cst_53 = arith.constant dense<0.000000e+00> : vector<1xf32>
      %89 = vector.multi_reduction <add>, %88, %cst_53 [0] : vector<8x1xf32> to vector<1xf32>
      %90 = vector.shape_cast %89 : vector<1xf32> to vector<1x1xf32>
      %c0_54 = arith.constant 0 : index
      %c0_55 = arith.constant 0 : index
      %91 = vector.load %arg14[%c0_54, %c0_55] : memref<1x1xf32, #tpu.memory_space<vmem>>, vector<1x1xf32>
      tpu.vector_store %arg14[%c0_54, %c0_55], %90 {strides = array<i32>} : memref<1x1xf32, #tpu.memory_space<vmem>>, vector<1x1xf32>,
    } else {
    }
    return
  }
  func.func @transform_0(%arg0: i32) -> (i32, i32) {
    %c0_i32 = arith.constant 0 : i32
    %c0_i32_0 = arith.constant 0 : i32
    %c0_i32_1 = arith.constant 0 : i32
    return %c0_i32, %c0_i32_0 : i32, i32
  }
  func.func @transform_1(%arg0: i32) -> (i32, i32) {
    %c0_i32 = arith.constant 0 : i32
    %c0_i32_0 = arith.constant 0 : i32
    %c0_i32_1 = arith.constant 0 : i32
    return %c0_i32, %c0_i32_0 : i32, i32
  }
  func.func @transform_2(%arg0: i32) -> (i32, i32) {
    %c0_i32 = arith.constant 0 : i32
    %c0_i32_0 = arith.constant 0 : i32
    %c0_i32_1 = arith.constant 0 : i32
    return %c0_i32, %c0_i32_0 : i32, i32
  }
  func.func @transform_3(%arg0: i32) -> (i32, i32) {
    %c0_i32 = arith.constant 0 : i32
    %c0_i32_0 = arith.constant 0 : i32
    %c0_i32_1 = arith.constant 0 : i32
    return %c0_i32, %c0_i32_0 : i32, i32
  }
  func.func @transform_4(%arg0: i32) -> (i32, i32) {
    %c0_i32 = arith.constant 0 : i32
    %c0_i32_0 = arith.constant 0 : i32
    %c0_i32_1 = arith.constant 0 : i32
    return %c0_i32, %c0_i32_0 : i32, i32
  }
  func.func @transform_5(%arg0: i32) -> (i32, i32) {
    %c0_i32 = arith.constant 0 : i32
    %c0_i32_0 = arith.constant 0 : i32
    %c0_i32_1 = arith.constant 0 : i32
    return %c0_i32, %c0_i32_0 : i32, i32
  }
  func.func @transform_6(%arg0: i32) -> (i32, i32) {
    %c0_i32 = arith.constant 0 : i32
    %c0_i32_0 = arith.constant 0 : i32
    %c0_i32_1 = arith.constant 0 : i32
    return %c0_i32, %c0_i32_0 : i32, i32
  }
  func.func @transform_7(%arg0: i32) -> (i32, i32) {
    %c0_i32 = arith.constant 0 : i32
    %c0_i32_0 = arith.constant 0 : i32
    %c0_i32_1 = arith.constant 0 : i32
    return %c0_i32, %c0_i32_0 : i32, i32
  }
  func.func @transform_8(%arg0: i32) -> (i32, i32) {
    %c0_i32 = arith.constant 0 : i32
    %c0_i32_0 = arith.constant 0 : i32
    %c0_i32_1 = arith.constant 0 : i32
    return %c0_i32, %c0_i32_0 : i32, i32
  }
  func.func @transform_9(%arg0: i32) -> (i32, i32, i32) {
    %c0_i32 = arith.constant 0 : i32
    %c0_i32_0 = arith.constant 0 : i32
    %c0_i32_1 = arith.constant 0 : i32
    return %arg0, %c0_i32, %c0_i32_0 : i32, i32, i32
  }
  func.func @transform_10(%arg0: i32) -> (i32, i32) {
    %c0_i32 = arith.constant 0 : i32
    %c0_i32_0 = arith.constant 0 : i32
    %c0_i32_1 = arith.constant 0 : i32
    return %c0_i32, %c0_i32_0 : i32, i32
  }
  func.func @transform_11(%arg0: i32) -> (i32, i32) {
    %c0_i32 = arith.constant 0 : i32
    %c0_i32_0 = arith.constant 0 : i32
    %c0_i32_1 = arith.constant 0 : i32
    return %c0_i32, %c0_i32_0 : i32, i32
  }
  func.func @transform_12(%arg0: i32) -> (i32, i32) {
    %c0_i32 = arith.constant 0 : i32
    %c0_i32_0 = arith.constant 0 : i32
    %c0_i32_1 = arith.constant 0 : i32
    return %c0_i32, %c0_i32_0 : i32, i32
  }
  func.func @transform_13(%arg0: i32) -> (i32, i32) {
    %c0_i32 = arith.constant 0 : i32
    %c0_i32_0 = arith.constant 0 : i32
    %c0_i32_1 = arith.constant 0 : i32
    return %c0_i32, %c0_i32_0 : i32, i32
  }
  func.func @transform_14(%arg0: i32) -> (i32, i32) {
    %c0_i32 = arith.constant 0 : i32
    %c0_i32_0 = arith.constant 0 : i32
    %c0_i32_1 = arith.constant 0 : i32
    return %c0_i32, %c0_i32_0 : i32, i32
  }
  func.func @transform_15(%arg0: i32) -> (i32, i32) {
    %c0_i32 = arith.constant 0 : i32
    %c0_i32_0 = arith.constant 0 : i32
    %c0_i32_1 = arith.constant 0 : i32
    return %c0_i32, %c0_i32_0 : i32, i32
  }
  func.func @transform_16(%arg0: i32) -> (i32, i32) {
    %c0_i32 = arith.constant 0 : i32
    %c0_i32_0 = arith.constant 0 : i32
    %c0_i32_1 = arith.constant 0 : i32
    return %c0_i32, %c0_i32_0 : i32, i32
  }
  func.func @transform_17(%arg0: i32) -> (i32, i32) {
    %c0_i32 = arith.constant 0 : i32
    %c0_i32_0 = arith.constant 0 : i32
    %c0_i32_1 = arith.constant 0 : i32
    return %c0_i32, %c0_i32_0 : i32, i32
  }
}

</mosaic_0001>

<llo_original>
// kernel: sawtooth_layer_forward.1
$region0: #{sawtooth_layer_forward.1}
  #allocation0 [shape = 'u32[]', space=smem, size = 0x4, offset = 0x4, fixed_abs, tag = 'smem constant byte address 0x4 - core index']
  #allocation1 [shape = 'u32[72,128]{1,0:T(1,128)}', space=vmem, size = 0x9000, scoped, tag = 'internal scratch']
  #allocation2 [shape = 'f32[8,128]{1,0:T(8,128)}', space=vmem, size = 0x1000, scoped, tag = 'scratch operand']
  #allocation3 [shape = 'f32[8,128]{1,0:T(8,128)}', space=vmem, size = 0x1000, scoped, tag = 'scratch operand']
  #allocation4 [shape = 'f32[8,128]{1,0:T(8,128)}', space=vmem, size = 0x1000, scoped, tag = 'scratch operand']
  #allocation5 [shape = 'f32[8,128]{1,0:T(8,128)}', space=vmem, size = 0x1000, scoped, tag = 'scratch operand']
  %s0 = inlined_call_operand.vmem [shape: f32[8,256], index: 0, kind: input, shape index: {}]
  %s1 = inlined_call_operand.vmem [shape: f32[256,128], index: 1, kind: input, shape index: {}]
  %s2 = inlined_call_operand.vmem [shape: f32[1,128], index: 2, kind: input, shape index: {}]
  %s3 = inlined_call_operand.vmem [shape: f32[1,128], index: 3, kind: input, shape index: {}]
  %s4 = inlined_call_operand.vmem [shape: f32[1,128], index: 4, kind: input, shape index: {}]
  %s5 = inlined_call_operand.vmem [shape: f32[8,128], index: 5, kind: input, shape index: {}]
  %s6 = inlined_call_operand.vmem [shape: f32[128,256], index: 6, kind: input, shape index: {}]
  %s7 = inlined_call_operand.vmem [shape: f32[128,256], index: 7, kind: input, shape index: {}]
  %s8 = inlined_call_operand.vmem [shape: f32[1,256], index: 8, kind: input, shape index: {}]
  %s9 = inlined_call_operand.vmem [shape: f32[50,8,128], index: 9, kind: input, shape index: {}]
  %s10 = inlined_call_operand.vmem [shape: f32[128,128], index: 10, kind: input, shape index: {}]
  %s11 = inlined_call_operand.vmem [shape: f32[128,256], index: 11, kind: input, shape index: {}]
  %s12 = inlined_call_operand.vmem [shape: f32[8,256], index: 12, kind: input, shape index: {}]
  %s13 = inlined_call_operand.hbm [shape: f32[1,1], index: 13, kind: output, shape index: {0}]
  %s14 = inlined_call_operand.hbm [shape: f32[1,1], index: 14, kind: output, shape index: {1}]
  %s15 = inlined_call_operand.vmem [shape: f32[128,256], index: 15, kind: output, shape index: {2}]
  %s16 = inlined_call_operand.hbm [shape: f32[8,256], index: 16, kind: output, shape index: {3}]
  %s17 = inlined_call_operand.hbm [shape: f32[8,128], index: 17, kind: output, shape index: {4}]
  %18 = xla_tuple %s13, %s14, %s15, %s16, %s17
  %s19 = sld [smem:[#allocation0]]
  $region125: #{sawtooth_layer_forward.1} parent=0
    _
  %s21 = ssub.s32 1, %s19
  %s22 = scalar_select 0, %s21, %s19
  $region1: #{sawtooth_layer_forward.1} parent=0
    #allocation6 [shape = 'u8[512]{0}', space=vmem, size = 0x400, scoped, tag = 'output window, operand 0, single buffered']
    #allocation7 [shape = 's32[2]{0}', space=sflag, size = 0x8, scoped, tag = 'scoped memory for sawtooth_layer_forward.1']
    #allocation8 [shape = 'u8[512]{0}', space=vmem, size = 0x400, scoped, tag = 'output window, operand 1, single buffered']
    #allocation9 [shape = 's32[1]{0}', space=sflag, size = 0x4, scoped, tag = 'scoped memory for sawtooth_layer_forward.1']
    #allocation10 [shape = 'u8[8192]{0}', space=vmem, size = 0x2000, scoped, tag = 'output window, operand 3, single buffered']
    #allocation11 [shape = 'u8[4096]{0}', space=vmem, size = 0x1000, scoped, tag = 'output window, operand 4, single buffered']
    #allocation12 [shape = 's32[1]{0}', space=sflag, size = 0x4, scoped, tag = 'scoped memory for sawtooth_layer_forward.1']
    %23 = vsyncpa [#allocation7], 0
    %24 = vsyncpa [#allocation9], 0
    %25 = vsyncpa [#allocation12], 0
    loop: start=0, step=1, limit=7
    $region2: #{sawtooth_layer_forward.1} parent=1 // loop_pre_header
      _
    $region3: #{sawtooth_layer_forward.1} parent=1 // loop_header
      %s27 = sphi 0, %s31
      %p28 = scmp.ge.s32.totalorder %s27, 7
      %s35 = sphi 0, %s35
      %s37 = sphi 0, %s35
      %s38 = sphi 0, %s37
      %s52 = sphi 0, %s38
      %s56 = sphi 0, %s56
      %s58 = sphi 0, %s56
      %s59 = sphi 0, %s58
      %s73 = sphi 0, %s59
      %s77 = sphi 0, %s77
      %s79 = sphi 0, %s77
      %s80 = sphi 0, %s79
      %s94 = sphi 0, %s80
      %s98 = sphi 0, %s98
      %s100 = sphi 0, %s98
      %s101 = sphi 0, %s100
      %s115 = sphi 0, %s101
      %s119 = sphi 0, %s119
      %s121 = sphi 0, %s119
      %s122 = sphi 0, %s121
      %s136 = sphi 0, %s122
      %s140 = sphi 0, %s140
      %s142 = sphi 0, %s140
      %s143 = sphi 0, %s142
      %s157 = sphi 0, %s143
      %s161 = sphi 0, %s161
      %s163 = sphi 0, %s161
      %s164 = sphi 0, %s163
      %s178 = sphi 0, %s164
      %s182 = sphi 0, %s182
      %s184 = sphi 0, %s182
      %s185 = sphi 0, %s184
      %s199 = sphi 0, %s185
      %s203 = sphi 0, %s203
      %s205 = sphi 0, %s203
      %s206 = sphi 0, %s205
      %s220 = sphi 0, %s206
      %s226 = sphi 0, %s228
      %s229 = sphi 0, %s226
      %s230 = sphi 0, %s229
      %s246 = sphi 0, %s230
      %s250 = sphi 0, %s250
      %s252 = sphi 0, %s250
      %s253 = sphi 0, %s252
      %s267 = sphi 0, %s253
      %s271 = sphi 0, %s271
      %s273 = sphi 0, %s271
      %s274 = sphi 0, %s273
      %s288 = sphi 0, %s274
      %s292 = sphi 0, %s292
      %s294 = sphi 0, %s292
      %s295 = sphi 0, %s294
      %s309 = sphi 0, %s295
      %s313 = sphi 0, %s313
      %s315 = sphi 0, %s313
      %s316 = sphi 0, %s315
      %s330 = sphi 0, %s316
      %s334 = sphi 0, %s334
      %s336 = sphi 0, %s334
      %s337 = sphi 0, %s336
      %s351 = sphi 0, %s337
      %s355 = sphi 0, %s355
      %s357 = sphi 0, %s355
      %s358 = sphi 0, %s357
      %s372 = sphi 0, %s358
      %s376 = sphi 0, %s376
      %s378 = sphi 0, %s376
      %s379 = sphi 0, %s378
      %s393 = sphi 0, %s379
      %s397 = sphi 0, %s397
      %s399 = sphi 0, %s397
      %s400 = sphi 0, %s399
      %s414 = sphi 0, %s400
    $region4: #{sawtooth_layer_forward.1} parent=1 // loop_header_branch
      %30 = sbr.rel (%p28) target = $region8
    $region5: #{sawtooth_layer_forward.1} parent=1 // loop_body
      %s32 = ssub.s32 %s27, 1
      %s33 = ssub.s32 %s27, 2
      %s34 = sadd.s32 %s27, 1
      %s36 = sadd.s32 %s35, 1
      %p39 = scmp.eq.s32.totalorder %s27, 4
      %p40 = scmp.ne.s32.totalorder %s35, %s37
      %p41 = scmp.eq.s32.totalorder %s27, 0
      %p42 = por %p40, %p41
      %p43 = scmp.ne.s32.totalorder %s35, %s37
      %p44 = scmp.eq.s32.totalorder %s32, 4
      %p45 = por %p43, %p44
      %p46 = scmp.ne.s32.totalorder %s37, %s38
      %p47 = scmp.eq.s32.totalorder %s32, 0
      %p48 = por %p46, %p47
      %p49 = scmp.ne.s32.totalorder %s37, %s38
      %p50 = scmp.eq.s32.totalorder %s33, 4
      %p51 = por %p49, %p50
      %p53 = scmp.ne.s32.totalorder %s38, %s52
      %p54 = scmp.eq.s32.totalorder %s33, 0
      %p55 = por %p53, %p54
      %s57 = sadd.s32 %s56, 1
      %p60 = scmp.eq.s32.totalorder %s27, 4
      %p61 = scmp.ne.s32.totalorder %s56, %s58
      %p62 = scmp.eq.s32.totalorder %s27, 0
      %p63 = por %p61, %p62
      %p64 = scmp.ne.s32.totalorder %s56, %s58
      %p65 = scmp.eq.s32.totalorder %s32, 4
      %p66 = por %p64, %p65
      %p67 = scmp.ne.s32.totalorder %s58, %s59
      %p68 = scmp.eq.s32.totalorder %s32, 0
      %p69 = por %p67, %p68
      %p70 = scmp.ne.s32.totalorder %s58, %s59
      %p71 = scmp.eq.s32.totalorder %s33, 4
      %p72 = por %p70, %p71
      %p74 = scmp.ne.s32.totalorder %s59, %s73
      %p75 = scmp.eq.s32.totalorder %s33, 0
      %p76 = por %p74, %p75
      %s78 = sadd.s32 %s77, 1
      %p81 = scmp.eq.s32.totalorder %s27, 4
      %p82 = scmp.ne.s32.totalorder %s77, %s79
      %p83 = scmp.eq.s32.totalorder %s27, 0
      %p84 = por %p82, %p83
      %p85 = scmp.ne.s32.totalorder %s77, %s79
      %p86 = scmp.eq.s32.totalorder %s32, 4
      %p87 = por %p85, %p86
      %p88 = scmp.ne.s32.totalorder %s79, %s80
      %p89 = scmp.eq.s32.totalorder %s32, 0
      %p90 = por %p88, %p89
      %p91 = scmp.ne.s32.totalorder %s79, %s80
      %p92 = scmp.eq.s32.totalorder %s33, 4
      %p93 = por %p91, %p92
      %p95 = scmp.ne.s32.totalorder %s80, %s94
      %p96 = scmp.eq.s32.totalorder %s33, 0
      %p97 = por %p95, %p96
      %s99 = sadd.s32 %s98, 1
      %p102 = scmp.eq.s32.totalorder %s27, 4
      %p103 = scmp.ne.s32.totalorder %s98, %s100
      %p104 = scmp.eq.s32.totalorder %s27, 0
      %p105 = por %p103, %p104
      %p106 = scmp.ne.s32.totalorder %s98, %s100
      %p107 = scmp.eq.s32.totalorder %s32, 4
      %p108 = por %p106, %p107
      %p109 = scmp.ne.s32.totalorder %s100, %s101
      %p110 = scmp.eq.s32.totalorder %s32, 0
      %p111 = por %p109, %p110
      %p112 = scmp.ne.s32.totalorder %s100, %s101
      %p113 = scmp.eq.s32.totalorder %s33, 4
      %p114 = por %p112, %p113
      %p116 = scmp.ne.s32.totalorder %s101, %s115
      %p117 = scmp.eq.s32.totalorder %s33, 0
      %p118 = por %p116, %p117
      %s120 = sadd.s32 %s119, 1
      %p123 = scmp.eq.s32.totalorder %s27, 4
      %p124 = scmp.ne.s32.totalorder %s119, %s121
      %p125 = scmp.eq.s32.totalorder %s27, 0
      %p126 = por %p124, %p125
      %p127 = scmp.ne.s32.totalorder %s119, %s121
      %p128 = scmp.eq.s32.totalorder %s32, 4
      %p129 = por %p127, %p128
      %p130 = scmp.ne.s32.totalorder %s121, %s122
      %p131 = scmp.eq.s32.totalorder %s32, 0
      %p132 = por %p130, %p131
      %p133 = scmp.ne.s32.totalorder %s121, %s122
      %p134 = scmp.eq.s32.totalorder %s33, 4
      %p135 = por %p133, %p134
      %p137 = scmp.ne.s32.totalorder %s122, %s136
      %p138 = scmp.eq.s32.totalorder %s33, 0
      %p139 = por %p137, %p138
      %s141 = sadd.s32 %s140, 1
      %p144 = scmp.eq.s32.totalorder %s27, 4
      %p145 = scmp.ne.s32.totalorder %s140, %s142
      %p146 = scmp.eq.s32.totalorder %s27, 0
      %p147 = por %p145, %p146
      %p148 = scmp.ne.s32.totalorder %s140, %s142
      %p149 = scmp.eq.s32.totalorder %s32, 4
      %p150 = por %p148, %p149
      %p151 = scmp.ne.s32.totalorder %s142, %s143
      %p152 = scmp.eq.s32.totalorder %s32, 0
      %p153 = por %p151, %p152
      %p154 = scmp.ne.s32.totalorder %s142, %s143
      %p155 = scmp.eq.s32.totalorder %s33, 4
      %p156 = por %p154, %p155
      %p158 = scmp.ne.s32.totalorder %s143, %s157
      %p159 = scmp.eq.s32.totalorder %s33, 0
      %p160 = por %p158, %p159
      %s162 = sadd.s32 %s161, 1
      %p165 = scmp.eq.s32.totalorder %s27, 4
      %p166 = scmp.ne.s32.totalorder %s161, %s163
      %p167 = scmp.eq.s32.totalorder %s27, 0
      %p168 = por %p166, %p167
      %p169 = scmp.ne.s32.totalorder %s161, %s163
      %p170 = scmp.eq.s32.totalorder %s32, 4
      %p171 = por %p169, %p170
      %p172 = scmp.ne.s32.totalorder %s163, %s164
      %p173 = scmp.eq.s32.totalorder %s32, 0
      %p174 = por %p172, %p173
      %p175 = scmp.ne.s32.totalorder %s163, %s164
      %p176 = scmp.eq.s32.totalorder %s33, 4
      %p177 = por %p175, %p176
      %p179 = scmp.ne.s32.totalorder %s164, %s178
      %p180 = scmp.eq.s32.totalorder %s33, 0
      %p181 = por %p179, %p180
      %s183 = sadd.s32 %s182, 1
      %p186 = scmp.eq.s32.totalorder %s27, 4
      %p187 = scmp.ne.s32.totalorder %s182, %s184
      %p188 = scmp.eq.s32.totalorder %s27, 0
      %p189 = por %p187, %p188
      %p190 = scmp.ne.s32.totalorder %s182, %s184
      %p191 = scmp.eq.s32.totalorder %s32, 4
      %p192 = por %p190, %p191
      %p193 = scmp.ne.s32.totalorder %s184, %s185
      %p194 = scmp.eq.s32.totalorder %s32, 0
      %p195 = por %p193, %p194
      %p196 = scmp.ne.s32.totalorder %s184, %s185
      %p197 = scmp.eq.s32.totalorder %s33, 4
      %p198 = por %p196, %p197
      %p200 = scmp.ne.s32.totalorder %s185, %s199
      %p201 = scmp.eq.s32.totalorder %s33, 0
      %p202 = por %p200, %p201
      %s204 = sadd.s32 %s203, 1
      %p207 = scmp.eq.s32.totalorder %s27, 4
      %p208 = scmp.ne.s32.totalorder %s203, %s205
      %p209 = scmp.eq.s32.totalorder %s27, 0
      %p210 = por %p208, %p209
      %p211 = scmp.ne.s32.totalorder %s203, %s205
      %p212 = scmp.eq.s32.totalorder %s32, 4
      %p213 = por %p211, %p212
      %p214 = scmp.ne.s32.totalorder %s205, %s206
      %p215 = scmp.eq.s32.totalorder %s32, 0
      %p216 = por %p214, %p215
      %p217 = scmp.ne.s32.totalorder %s205, %s206
      %p218 = scmp.eq.s32.totalorder %s33, 4
      %p219 = por %p217, %p218
      %p221 = scmp.ne.s32.totalorder %s206, %s220
      %p222 = scmp.eq.s32.totalorder %s33, 0
      %p223 = por %p221, %p222
      %s224 = ssub.s32 %s27, %s34
      %p225 = scmp.eq.s32.totalorder %s224, 0
      %s227 = sadd.s32 %s226, 1
      %s228 = scalar_select %p225, %s226, %s227
      %p231 = pneg %p225
      %p232 = scmp.eq.s32.totalorder %s27, 4
      %p233 = por %p231, %p232
      %p234 = scmp.ne.s32.totalorder %s226, %s229
      %p235 = scmp.eq.s32.totalorder %s27, 0
      %p236 = por %p234, %p235
      %p237 = scmp.ne.s32.totalorder %s226, %s229
      %p238 = scmp.eq.s32.totalorder %s32, 4
      %p239 = por %p237, %p238
      %p240 = scmp.ne.s32.totalorder %s229, %s230
      %p241 = scmp.eq.s32.totalorder %s32, 0
      %p242 = por %p240, %p241
      %p243 = scmp.ne.s32.totalorder %s229, %s230
      %p244 = scmp.eq.s32.totalorder %s33, 4
      %p245 = por %p243, %p244
      %p247 = scmp.ne.s32.totalorder %s230, %s246
      %p248 = scmp.eq.s32.totalorder %s33, 0
      %p249 = por %p247, %p248
      %s251 = sadd.s32 %s250, 1
      %p254 = scmp.eq.s32.totalorder %s27, 4
      %p255 = scmp.ne.s32.totalorder %s250, %s252
      %p256 = scmp.eq.s32.totalorder %s27, 0
      %p257 = por %p255, %p256
      %p258 = scmp.ne.s32.totalorder %s250, %s252
      %p259 = scmp.eq.s32.totalorder %s32, 4
      %p260 = por %p258, %p259
      %p261 = scmp.ne.s32.totalorder %s252, %s253
      %p262 = scmp.eq.s32.totalorder %s32, 0
      %p263 = por %p261, %p262
      %p264 = scmp.ne.s32.totalorder %s252, %s253
      %p265 = scmp.eq.s32.totalorder %s33, 4
      %p266 = por %p264, %p265
      %p268 = scmp.ne.s32.totalorder %s253, %s267
      %p269 = scmp.eq.s32.totalorder %s33, 0
      %p270 = por %p268, %p269
      %s272 = sadd.s32 %s271, 1
      %p275 = scmp.eq.s32.totalorder %s27, 4
      %p276 = scmp.ne.s32.totalorder %s271, %s273
      %p277 = scmp.eq.s32.totalorder %s27, 0
      %p278 = por %p276, %p277
      %p279 = scmp.ne.s32.totalorder %s271, %s273
      %p280 = scmp.eq.s32.totalorder %s32, 4
      %p281 = por %p279, %p280
      %p282 = scmp.ne.s32.totalorder %s273, %s274
      %p283 = scmp.eq.s32.totalorder %s32, 0
      %p284 = por %p282, %p283
      %p285 = scmp.ne.s32.totalorder %s273, %s274
      %p286 = scmp.eq.s32.totalorder %s33, 4
      %p287 = por %p285, %p286
      %p289 = scmp.ne.s32.totalorder %s274, %s288
      %p290 = scmp.eq.s32.totalorder %s33, 0
      %p291 = por %p289, %p290
      %s293 = sadd.s32 %s292, 1
      %p296 = scmp.eq.s32.totalorder %s27, 4
      %p297 = scmp.ne.s32.totalorder %s292, %s294
      %p298 = scmp.eq.s32.totalorder %s27, 0
      %p299 = por %p297, %p298
      %p300 = scmp.ne.s32.totalorder %s292, %s294
      %p301 = scmp.eq.s32.totalorder %s32, 4
      %p302 = por %p300, %p301
      %p303 = scmp.ne.s32.totalorder %s294, %s295
      %p304 = scmp.eq.s32.totalorder %s32, 0
      %p305 = por %p303, %p304
      %p306 = scmp.ne.s32.totalorder %s294, %s295
      %p307 = scmp.eq.s32.totalorder %s33, 4
      %p308 = por %p306, %p307
      %p310 = scmp.ne.s32.totalorder %s295, %s309
      %p311 = scmp.eq.s32.totalorder %s33, 0
      %p312 = por %p310, %p311
      %s314 = sadd.s32 %s313, 1
      %p317 = scmp.eq.s32.totalorder %s27, 4
      %p318 = scmp.ne.s32.totalorder %s313, %s315
      %p319 = scmp.eq.s32.totalorder %s27, 0
      %p320 = por %p318, %p319
      %p321 = scmp.ne.s32.totalorder %s313, %s315
      %p322 = scmp.eq.s32.totalorder %s32, 4
      %p323 = por %p321, %p322
      %p324 = scmp.ne.s32.totalorder %s315, %s316
      %p325 = scmp.eq.s32.totalorder %s32, 0
      %p326 = por %p324, %p325
      %p327 = scmp.ne.s32.totalorder %s315, %s316
      %p328 = scmp.eq.s32.totalorder %s33, 4
      %p329 = por %p327, %p328
      %p331 = scmp.ne.s32.totalorder %s316, %s330
      %p332 = scmp.eq.s32.totalorder %s33, 0
      %p333 = por %p331, %p332
      %s335 = sadd.s32 %s334, 1
      %p338 = scmp.eq.s32.totalorder %s27, 4
      %p339 = scmp.ne.s32.totalorder %s334, %s336
      %p340 = scmp.eq.s32.totalorder %s27, 0
      %p341 = por %p339, %p340
      %p342 = scmp.ne.s32.totalorder %s334, %s336
      %p343 = scmp.eq.s32.totalorder %s32, 4
      %p344 = por %p342, %p343
      %p345 = scmp.ne.s32.totalorder %s336, %s337
      %p346 = scmp.eq.s32.totalorder %s32, 0
      %p347 = por %p345, %p346
      %p348 = scmp.ne.s32.totalorder %s336, %s337
      %p349 = scmp.eq.s32.totalorder %s33, 4
      %p350 = por %p348, %p349
      %p352 = scmp.ne.s32.totalorder %s337, %s351
      %p353 = scmp.eq.s32.totalorder %s33, 0
      %p354 = por %p352, %p353
      %s356 = sadd.s32 %s355, 1
      %p359 = scmp.eq.s32.totalorder %s27, 4
      %p360 = scmp.ne.s32.totalorder %s355, %s357
      %p361 = scmp.eq.s32.totalorder %s27, 0
      %p362 = por %p360, %p361
      %p363 = scmp.ne.s32.totalorder %s355, %s357
      %p364 = scmp.eq.s32.totalorder %s32, 4
      %p365 = por %p363, %p364
      %p366 = scmp.ne.s32.totalorder %s357, %s358
      %p367 = scmp.eq.s32.totalorder %s32, 0
      %p368 = por %p366, %p367
      %p369 = scmp.ne.s32.totalorder %s357, %s358
      %p370 = scmp.eq.s32.totalorder %s33, 4
      %p371 = por %p369, %p370
      %p373 = scmp.ne.s32.totalorder %s358, %s372
      %p374 = scmp.eq.s32.totalorder %s33, 0
      %p375 = por %p373, %p374
      %s377 = sadd.s32 %s376, 1
      %p380 = scmp.eq.s32.totalorder %s27, 4
      %p381 = scmp.ne.s32.totalorder %s376, %s378
      %p382 = scmp.eq.s32.totalorder %s27, 0
      %p383 = por %p381, %p382
      %p384 = scmp.ne.s32.totalorder %s376, %s378
      %p385 = scmp.eq.s32.totalorder %s32, 4
      %p386 = por %p384, %p385
      %p387 = scmp.ne.s32.totalorder %s378, %s379
      %p388 = scmp.eq.s32.totalorder %s32, 0
      %p389 = por %p387, %p388
      %p390 = scmp.ne.s32.totalorder %s378, %s379
      %p391 = scmp.eq.s32.totalorder %s33, 4
      %p392 = por %p390, %p391
      %p394 = scmp.ne.s32.totalorder %s379, %s393
      %p395 = scmp.eq.s32.totalorder %s33, 0
      %p396 = por %p394, %p395
      %s398 = sadd.s32 %s397, 1
      %p401 = scmp.eq.s32.totalorder %s27, 4
      %p402 = scmp.ne.s32.totalorder %s397, %s399
      %p403 = scmp.eq.s32.totalorder %s27, 0
      %p404 = por %p402, %p403
      %p405 = scmp.ne.s32.totalorder %s397, %s399
      %p406 = scmp.eq.s32.totalorder %s32, 4
      %p407 = por %p405, %p406
      %p408 = scmp.ne.s32.totalorder %s399, %s400
      %p409 = scmp.eq.s32.totalorder %s32, 0
      %p410 = por %p408, %p409
      %p411 = scmp.ne.s32.totalorder %s399, %s400
      %p412 = scmp.eq.s32.totalorder %s33, 4
      %p413 = por %p411, %p412
      %p415 = scmp.ne.s32.totalorder %s400, %s414
      %p416 = scmp.eq.s32.totalorder %s33, 0
      %p417 = por %p415, %p416
      %p418 = scmp.le.s32.totalorder 1, %s27
      %p419 = scmp.lt.s32.totalorder %s27, 6
      %p420 = pnand %p418, %p419
      %p421 = pneg %p420
      // Predicated region
      $region9: #{sawtooth_layer_forward.1} parent=5 // pred_check
        _
      $region10: #{sawtooth_layer_forward.1} parent=5 // pred_check_branch
        %423 = sbr.rel (%p420) target = $region12
      $region11: #{sawtooth_layer_forward.1} parent=5 // pred_region
        %s424 = ssub.s32 %s27, 1
        // Predicated region
        $region13: #{sawtooth_layer_forward.1} parent=11 // pred_check
          %p425 = pneg %p48
        $region14: #{sawtooth_layer_forward.1} parent=11 // pred_check_branch
          %427 = sbr.rel (%p425) target = $region16
        $region15: #{sawtooth_layer_forward.1} parent=11 // pred_region
          _
        $region16: #{sawtooth_layer_forward.1} parent=11 // pred_fallthru
          _
        // Predicated region
        $region17: #{sawtooth_layer_forward.1} parent=11 // pred_check
          %p428 = pneg %p69
        $region18: #{sawtooth_layer_forward.1} parent=11 // pred_check_branch
          %430 = sbr.rel (%p428) target = $region20
        $region19: #{sawtooth_layer_forward.1} parent=11 // pred_region
          _
        $region20: #{sawtooth_layer_forward.1} parent=11 // pred_fallthru
          _
        // Predicated region
        $region21: #{sawtooth_layer_forward.1} parent=11 // pred_check
          %p431 = pneg %p90
        $region22: #{sawtooth_layer_forward.1} parent=11 // pred_check_branch
          %433 = sbr.rel (%p431) target = $region24
        $region23: #{sawtooth_layer_forward.1} parent=11 // pred_region
          _
        $region24: #{sawtooth_layer_forward.1} parent=11 // pred_fallthru
          _
        // Predicated region
        $region25: #{sawtooth_layer_forward.1} parent=11 // pred_check
          %p434 = pneg %p111
        $region26: #{sawtooth_layer_forward.1} parent=11 // pred_check_branch
          %436 = sbr.rel (%p434) target = $region28
        $region27: #{sawtooth_layer_forward.1} parent=11 // pred_region
          _
        $region28: #{sawtooth_layer_forward.1} parent=11 // pred_fallthru
          _
        // Predicated region
        $region29: #{sawtooth_layer_forward.1} parent=11 // pred_check
          %p437 = pneg %p132
        $region30: #{sawtooth_layer_forward.1} parent=11 // pred_check_branch
          %439 = sbr.rel (%p437) target = $region32
        $region31: #{sawtooth_layer_forward.1} parent=11 // pred_region
          _
        $region32: #{sawtooth_layer_forward.1} parent=11 // pred_fallthru
          _
        // Predicated region
        $region33: #{sawtooth_layer_forward.1} parent=11 // pred_check
          %p440 = pneg %p153
        $region34: #{sawtooth_layer_forward.1} parent=11 // pred_check_branch
          %442 = sbr.rel (%p440) target = $region36
        $region35: #{sawtooth_layer_forward.1} parent=11 // pred_region
          _
        $region36: #{sawtooth_layer_forward.1} parent=11 // pred_fallthru
          _
        // Predicated region
        $region37: #{sawtooth_layer_forward.1} parent=11 // pred_check
          %p443 = pneg %p174
        $region38: #{sawtooth_layer_forward.1} parent=11 // pred_check_branch
          %445 = sbr.rel (%p443) target = $region40
        $region39: #{sawtooth_layer_forward.1} parent=11 // pred_region
          _
        $region40: #{sawtooth_layer_forward.1} parent=11 // pred_fallthru
          _
        // Predicated region
        $region41: #{sawtooth_layer_forward.1} parent=11 // pred_check
          %p446 = pneg %p195
        $region42: #{sawtooth_layer_forward.1} parent=11 // pred_check_branch
          %448 = sbr.rel (%p446) target = $region44
        $region43: #{sawtooth_layer_forward.1} parent=11 // pred_region
          _
        $region44: #{sawtooth_layer_forward.1} parent=11 // pred_fallthru
          _
        // Predicated region
        $region45: #{sawtooth_layer_forward.1} parent=11 // pred_check
          %p449 = pneg %p216
        $region46: #{sawtooth_layer_forward.1} parent=11 // pred_check_branch
          %451 = sbr.rel (%p449) target = $region48
        $region47: #{sawtooth_layer_forward.1} parent=11 // pred_region
          _
        $region48: #{sawtooth_layer_forward.1} parent=11 // pred_fallthru
          _
        // Predicated region
        $region49: #{sawtooth_layer_forward.1} parent=11 // pred_check
          %p452 = pneg %p263
        $region50: #{sawtooth_layer_forward.1} parent=11 // pred_check_branch
          %454 = sbr.rel (%p452) target = $region52
        $region51: #{sawtooth_layer_forward.1} parent=11 // pred_region
          _
        $region52: #{sawtooth_layer_forward.1} parent=11 // pred_fallthru
          _
        // Predicated region
        $region53: #{sawtooth_layer_forward.1} parent=11 // pred_check
          %p455 = pneg %p284
        $region54: #{sawtooth_layer_forward.1} parent=11 // pred_check_branch
          %457 = sbr.rel (%p455) target = $region56
        $region55: #{sawtooth_layer_forward.1} parent=11 // pred_region
          _
        $region56: #{sawtooth_layer_forward.1} parent=11 // pred_fallthru
          _
        // Predicated region
        $region57: #{sawtooth_layer_forward.1} parent=11 // pred_check
          %p458 = pneg %p305
        $region58: #{sawtooth_layer_forward.1} parent=11 // pred_check_branch
          %460 = sbr.rel (%p458) target = $region60
        $region59: #{sawtooth_layer_forward.1} parent=11 // pred_region
          _
        $region60: #{sawtooth_layer_forward.1} parent=11 // pred_fallthru
          _
      $region12: #{sawtooth_layer_forward.1} parent=5 // pred_fallthru
        _
      %p461 = scmp.lt.s32.totalorder %s27, 5
      // Predicated region
      $region61: #{sawtooth_layer_forward.1} parent=5 // pred_check
        %p462 = pneg %p461
      $region62: #{sawtooth_layer_forward.1} parent=5 // pred_check_branch
        %464 = sbr.rel (%p462) target = $region64
      $region63: #{sawtooth_layer_forward.1} parent=5 // pred_region
        // Predicated region
        $region65: #{sawtooth_layer_forward.1} parent=63 // pred_check
          %p465 = pneg %p236
        $region66: #{sawtooth_layer_forward.1} parent=63 // pred_check_branch
          %467 = sbr.rel (%p465) target = $region68
        $region67: #{sawtooth_layer_forward.1} parent=63 // pred_region
          %s468 = smul.u32 10, %s27
          %p469 = scmp.lt.s32.totalorder %s468, 49
          %s470 = scalar_select %p469, %s468, 49
          %s471 = smul.addr %s470, 8
          %s472 = scalar_lea.vmem %s9, %s471
          %s473 = smul.u32 10, %s27
        $region68: #{sawtooth_layer_forward.1} parent=63 // pred_fallthru
          _
      $region64: #{sawtooth_layer_forward.1} parent=5 // pred_fallthru
        _
      %p474 = scmp.le.s32.totalorder 1, %s27
      %p475 = scmp.lt.s32.totalorder %s27, 6
      %p476 = pnand %p474, %p475
      %p477 = pneg %p476
      // Predicated region
      $region69: #{sawtooth_layer_forward.1} parent=5 // pred_check
        _
      $region70: #{sawtooth_layer_forward.1} parent=5 // pred_check_branch
        %479 = sbr.rel (%p476) target = $region72
      $region71: #{sawtooth_layer_forward.1} parent=5 // pred_region
        %s480 = ssub.s32 %s27, 1
        %p481 = pneg %p48
        %p482 = pneg %p45
        %p483 = pneg %p69
        %p484 = pneg %p66
        %p485 = pneg %p90
        %p486 = pneg %p87
        %p487 = pneg %p111
        %p488 = pneg %p108
        %p489 = pneg %p132
        %p490 = pneg %p129
        %p491 = pneg %p153
        %p492 = pneg %p150
        %p493 = pneg %p174
        %p494 = pneg %p171
        %p495 = pneg %p195
        %p496 = pneg %p192
        %p497 = pneg %p216
        %p498 = pneg %p213
        %s499 = smul.u32 10, %s32
        %p500 = scmp.lt.s32.totalorder %s499, 49
        %s501 = scalar_select %p500, %s499, 49
        %s502 = smul.addr %s501, 8
        %s503 = scalar_lea.vmem %s9, %s502
        %p504 = pneg %p242
        %p505 = pneg %p239
        %p506 = pneg %p263
        %p507 = pneg %p260
        %p508 = pneg %p284
        %p509 = pneg %p281
        %p510 = pneg %p305
        %p511 = pneg %p302
        %p512 = pneg %p326
        %p513 = pneg %p323
        %p514 = pneg %p347
        %p515 = pneg %p344
        %p516 = pneg %p368
        %p517 = pneg %p365
        %p518 = pneg %p389
        %p519 = pneg %p386
        %p520 = pneg %p410
        %p521 = pneg %p407
        %s522 = smul.u32 10, %s32
        %p523 = scmp.lt.s32.totalorder %s522, 49
        %s524 = scalar_select %p523, %s522, 49
        %s525 = smul.addr %s524, 8
        %s526 = scalar_lea.vmem %s9, %s525
        %s527 = smul.u32 10, %s32
        %p528 = scmp.eq.s32.totalorder %s32, 0
        // Predicated region
        $region73: #{sawtooth_layer_forward.1} parent=71 // pred_check
          %p529 = pneg %p528
        $region74: #{sawtooth_layer_forward.1} parent=71 // pred_check_branch
          %531 = sbr.rel (%p529) target = $region76
        $region75: #{sawtooth_layer_forward.1} parent=71 // pred_region
          %v532 = vld [vmem:[%s0] sm:$0xff]
          %v533 = vld [vmem:[%s0 + $0x8] sm:$0xff]
          %v534 = vld [vmem:[%s1] sm:$0xff]
          %v535 = vld [vmem:[%s1 + $0x8] sm:$0xff]
          %v536 = vld [vmem:[%s1 + $0x10] sm:$0xff]
          %v537 = vld [vmem:[%s1 + $0x18] sm:$0xff]
          %v538 = vld [vmem:[%s1 + $0x20] sm:$0xff]
          %v539 = vld [vmem:[%s1 + $0x28] sm:$0xff]
          %v540 = vld [vmem:[%s1 + $0x30] sm:$0xff]
          %v541 = vld [vmem:[%s1 + $0x38] sm:$0xff]
          %v542 = vld [vmem:[%s1 + $0x40] sm:$0xff]
          %v543 = vld [vmem:[%s1 + $0x48] sm:$0xff]
          %v544 = vld [vmem:[%s1 + $0x50] sm:$0xff]
          %v545 = vld [vmem:[%s1 + $0x58] sm:$0xff]
          %v546 = vld [vmem:[%s1 + $0x60] sm:$0xff]
          %v547 = vld [vmem:[%s1 + $0x68] sm:$0xff]
          %v548 = vld [vmem:[%s1 + $0x70] sm:$0xff]
          %v549 = vld [vmem:[%s1 + $0x78] sm:$0xff]
          %v550 = vld [vmem:[%s1 + $0x80] sm:$0xff]
          %v551 = vld [vmem:[%s1 + $0x88] sm:$0xff]
          %v552 = vld [vmem:[%s1 + $0x90] sm:$0xff]
          %v553 = vld [vmem:[%s1 + $0x98] sm:$0xff]
          %v554 = vld [vmem:[%s1 + $0xa0] sm:$0xff]
          %v555 = vld [vmem:[%s1 + $0xa8] sm:$0xff]
          %v556 = vld [vmem:[%s1 + $0xb0] sm:$0xff]
          %v557 = vld [vmem:[%s1 + $0xb8] sm:$0xff]
          %v558 = vld [vmem:[%s1 + $0xc0] sm:$0xff]
          %v559 = vld [vmem:[%s1 + $0xc8] sm:$0xff]
          %v560 = vld [vmem:[%s1 + $0xd0] sm:$0xff]
          %v561 = vld [vmem:[%s1 + $0xd8] sm:$0xff]
          %v562 = vld [vmem:[%s1 + $0xe0] sm:$0xff]
          %v563 = vld [vmem:[%s1 + $0xe8] sm:$0xff]
          %v564 = vld [vmem:[%s1 + $0xf0] sm:$0xff]
          %v565 = vld [vmem:[%s1 + $0xf8] sm:$0xff]
          %v566 = vld [vmem:[%s2] sm:$0x1]
          %v568 = vperm.slane %v566, 0
          %570 = vmatpush.msra.mxu0 %v549
          %571 = vmatpush.msra.mxu0 %v548
          %572 = vmatpush.msra.mxu0 %v547
          %573 = vmatpush.msra.mxu0 %v546
          %574 = vmatpush.msra.mxu0 %v545
          %575 = vmatpush.msra.mxu0 %v544
          %576 = vmatpush.msra.mxu0 %v543
          %577 = vmatpush.msra.mxu0 %v542
          %578 = vmatpush.msra.mxu0 %v541
          %579 = vmatpush.msra.mxu0 %v540
          %580 = vmatpush.msra.mxu0 %v539
          %581 = vmatpush.msra.mxu0 %v538
          %582 = vmatpush.msra.mxu0 %v537
          %583 = vmatpush.msra.mxu0 %v536
          %584 = vmatpush.msra.mxu0 %v535
          %585 = vmatpush.msra.mxu0 %v534
          %586 = vmatmul.f32.gmra.mxu0 %v532
          %v587 = vpop.f32.mrf.mxu0
          %v588 = vadd.f32 %v568, %v587
          %589 = vdwg.mxu0
          %590 = vmatpush.msra.mxu0 %v565
          %591 = vmatpush.msra.mxu0 %v564
          %592 = vmatpush.msra.mxu0 %v563
          %593 = vmatpush.msra.mxu0 %v562
          %594 = vmatpush.msra.mxu0 %v561
          %595 = vmatpush.msra.mxu0 %v560
          %596 = vmatpush.msra.mxu0 %v559
          %597 = vmatpush.msra.mxu0 %v558
          %598 = vmatpush.msra.mxu0 %v557
          %599 = vmatpush.msra.mxu0 %v556
          %600 = vmatpush.msra.mxu0 %v555
          %601 = vmatpush.msra.mxu0 %v554
          %602 = vmatpush.msra.mxu0 %v553
          %603 = vmatpush.msra.mxu0 %v552
          %604 = vmatpush.msra.mxu0 %v551
          %605 = vmatpush.msra.mxu0 %v550
          %606 = vmatmul.f32.gmra.mxu0 %v533
          %v607 = vpop.f32.mrf.mxu0
          %v608 = vadd.f32 %v588, %v607
          %609 = vdwg.mxu0
          %v610 = vrot.slane %v608, 4
          %v611 = vadd.f32 %v608, %v610
          %v612 = vrot.slane %v611, 2
          %v613 = vadd.f32 %v611, %v612
          %v614 = vrot.slane %v613, 1
          %v615 = vadd.f32 %v613, %v614
          %v616 = vrcp.pop 8.0
          %v617 = vmul.f32 8.0, %v616
          %v618 = vsub.f32 1.0, %v617
          %v619 = vmul.f32 %v616, %v618
          %v620 = vadd.f32 %v616, %v619
          %vm621 = vweird.f32 %v616
          %v622 = vsel %vm621, %v616, %v620
          %v623 = vmul.f32 %v615, %v622
          %v624 = vsub.f32 %v608, %v623
          %v625 = vmul.f32 %v624, %v624
          %v626 = vrot.slane %v625, 4
          %v627 = vadd.f32 %v625, %v626
          %v628 = vrot.slane %v627, 2
          %v629 = vadd.f32 %v627, %v628
          %v630 = vrot.slane %v629, 1
          %v631 = vadd.f32 %v629, %v630
          %v632 = vmul.f32 %v631, %v622
          %v633 = vadd.f32 %v632, 1e-05
          %v634 = vrsqrt.pop %v633
          %v635 = vmul.f32 %v634, %v633
          %v636 = vmul.f32 %v635, %v634
          %v637 = vmul.f32 0.5, %v636
          %v638 = vsub.f32 1.5, %v637
          %v639 = vmul.f32 %v634, %v638
          %vm640 = vweird.f32 %v633
          %vm641 = vweird.f32 %v634
          %vm642 = vmor %vm640, %vm641
          %v643 = vsel %vm642, %v634, %v639
          %v644 = vmul.f32 %v624, %v643
          %v645 = vld [vmem:[%s3] sm:$0x1]
          %v647 = vperm.slane %v645, 0
          %v649 = vmul.f32 %v647, %v644
          %v650 = vld [vmem:[%s4] sm:$0x1]
          %v652 = vperm.slane %v650, 0
          %v654 = vadd.f32 %v649, %v652
          %v655 = vmax.f32 %v654, 0.0
          %v656 = vld [vmem:[%s6] sm:$0xff]
          %v657 = vld [vmem:[%s6 + $0x8] sm:$0xff]
          %v658 = vld [vmem:[%s6 + $0x10] sm:$0xff]
          %v659 = vld [vmem:[%s6 + $0x18] sm:$0xff]
          %v660 = vld [vmem:[%s6 + $0x20] sm:$0xff]
          %v661 = vld [vmem:[%s6 + $0x28] sm:$0xff]
          %v662 = vld [vmem:[%s6 + $0x30] sm:$0xff]
          %v663 = vld [vmem:[%s6 + $0x38] sm:$0xff]
          %v664 = vld [vmem:[%s6 + $0x40] sm:$0xff]
          %v665 = vld [vmem:[%s6 + $0x48] sm:$0xff]
          %v666 = vld [vmem:[%s6 + $0x50] sm:$0xff]
          %v667 = vld [vmem:[%s6 + $0x58] sm:$0xff]
          %v668 = vld [vmem:[%s6 + $0x60] sm:$0xff]
          %v669 = vld [vmem:[%s6 + $0x68] sm:$0xff]
          %v670 = vld [vmem:[%s6 + $0x70] sm:$0xff]
          %v671 = vld [vmem:[%s6 + $0x78] sm:$0xff]
          %v672 = vld [vmem:[%s6 + $0x80] sm:$0xff]
          %v673 = vld [vmem:[%s6 + $0x88] sm:$0xff]
          %v674 = vld [vmem:[%s6 + $0x90] sm:$0xff]
          %v675 = vld [vmem:[%s6 + $0x98] sm:$0xff]
          %v676 = vld [vmem:[%s6 + $0xa0] sm:$0xff]
          %v677 = vld [vmem:[%s6 + $0xa8] sm:$0xff]
          %v678 = vld [vmem:[%s6 + $0xb0] sm:$0xff]
          %v679 = vld [vmem:[%s6 + $0xb8] sm:$0xff]
          %v680 = vld [vmem:[%s6 + $0xc0] sm:$0xff]
          %v681 = vld [vmem:[%s6 + $0xc8] sm:$0xff]
          %v682 = vld [vmem:[%s6 + $0xd0] sm:$0xff]
          %v683 = vld [vmem:[%s6 + $0xd8] sm:$0xff]
          %v684 = vld [vmem:[%s6 + $0xe0] sm:$0xff]
          %v685 = vld [vmem:[%s6 + $0xe8] sm:$0xff]
          %v686 = vld [vmem:[%s6 + $0xf0] sm:$0xff]
          %v687 = vld [vmem:[%s6 + $0xf8] sm:$0xff]
          %v688 = vld [vmem:[%s5] sm:$0xff]
          %v689 = vld [vmem:[%s7] sm:$0xff]
          %v690 = vld [vmem:[%s7 + $0x8] sm:$0xff]
          %v691 = vld [vmem:[%s7 + $0x10] sm:$0xff]
          %v692 = vld [vmem:[%s7 + $0x18] sm:$0xff]
          %v693 = vld [vmem:[%s7 + $0x20] sm:$0xff]
          %v694 = vld [vmem:[%s7 + $0x28] sm:$0xff]
          %v695 = vld [vmem:[%s7 + $0x30] sm:$0xff]
          %v696 = vld [vmem:[%s7 + $0x38] sm:$0xff]
          %v697 = vld [vmem:[%s7 + $0x40] sm:$0xff]
          %v698 = vld [vmem:[%s7 + $0x48] sm:$0xff]
          %v699 = vld [vmem:[%s7 + $0x50] sm:$0xff]
          %v700 = vld [vmem:[%s7 + $0x58] sm:$0xff]
          %v701 = vld [vmem:[%s7 + $0x60] sm:$0xff]
          %v702 = vld [vmem:[%s7 + $0x68] sm:$0xff]
          %v703 = vld [vmem:[%s7 + $0x70] sm:$0xff]
          %v704 = vld [vmem:[%s7 + $0x78] sm:$0xff]
          %v705 = vld [vmem:[%s7 + $0x80] sm:$0xff]
          %v706 = vld [vmem:[%s7 + $0x88] sm:$0xff]
          %v707 = vld [vmem:[%s7 + $0x90] sm:$0xff]
          %v708 = vld [vmem:[%s7 + $0x98] sm:$0xff]
          %v709 = vld [vmem:[%s7 + $0xa0] sm:$0xff]
          %v710 = vld [vmem:[%s7 + $0xa8] sm:$0xff]
          %v711 = vld [vmem:[%s7 + $0xb0] sm:$0xff]
          %v712 = vld [vmem:[%s7 + $0xb8] sm:$0xff]
          %v713 = vld [vmem:[%s7 + $0xc0] sm:$0xff]
          %v714 = vld [vmem:[%s7 + $0xc8] sm:$0xff]
          %v715 = vld [vmem:[%s7 + $0xd0] sm:$0xff]
          %v716 = vld [vmem:[%s7 + $0xd8] sm:$0xff]
          %v717 = vld [vmem:[%s7 + $0xe0] sm:$0xff]
          %v718 = vld [vmem:[%s7 + $0xe8] sm:$0xff]
          %v719 = vld [vmem:[%s7 + $0xf0] sm:$0xff]
          %v720 = vld [vmem:[%s7 + $0xf8] sm:$0xff]
          %721 = vmatpush.msra.mxu0 %v719
          %722 = vmatpush.msra.mxu0 %v717
          %723 = vmatpush.msra.mxu0 %v715
          %724 = vmatpush.msra.mxu0 %v713
          %725 = vmatpush.msra.mxu0 %v711
          %726 = vmatpush.msra.mxu0 %v709
          %727 = vmatpush.msra.mxu0 %v707
          %728 = vmatpush.msra.mxu0 %v705
          %729 = vmatpush.msra.mxu0 %v703
          %730 = vmatpush.msra.mxu0 %v701
          %731 = vmatpush.msra.mxu0 %v699
          %732 = vmatpush.msra.mxu0 %v697
          %733 = vmatpush.msra.mxu0 %v695
          %734 = vmatpush.msra.mxu0 %v693
          %735 = vmatpush.msra.mxu0 %v691
          %736 = vmatpush.msra.mxu0 %v689
          %737 = vmatmul.f32.gmra.mxu0 %v688
          %v738 = vpop.f32.mrf.mxu0
          %v739 = vadd.f32 0.0, %v738
          %740 = vdwg.mxu0
          %741 = vmatpush.msra.mxu0 %v720
          %742 = vmatpush.msra.mxu0 %v718
          %743 = vmatpush.msra.mxu0 %v716
          %744 = vmatpush.msra.mxu0 %v714
          %745 = vmatpush.msra.mxu0 %v712
          %746 = vmatpush.msra.mxu0 %v710
          %747 = vmatpush.msra.mxu0 %v708
          %748 = vmatpush.msra.mxu0 %v706
          %749 = vmatpush.msra.mxu0 %v704
          %750 = vmatpush.msra.mxu0 %v702
          %751 = vmatpush.msra.mxu0 %v700
          %752 = vmatpush.msra.mxu0 %v698
          %753 = vmatpush.msra.mxu0 %v696
          %754 = vmatpush.msra.mxu0 %v694
          %755 = vmatpush.msra.mxu0 %v692
          %756 = vmatpush.msra.mxu0 %v690
          %757 = vmatmul.f32.gmra.mxu0 %v688
          %v758 = vpop.f32.mrf.mxu0
          %v759 = vadd.f32 0.0, %v758
          %760 = vdwg.mxu0
          %761 = vmatpush.msra.mxu0 %v686
          %762 = vmatpush.msra.mxu0 %v684
          %763 = vmatpush.msra.mxu0 %v682
          %764 = vmatpush.msra.mxu0 %v680
          %765 = vmatpush.msra.mxu0 %v678
          %766 = vmatpush.msra.mxu0 %v676
          %767 = vmatpush.msra.mxu0 %v674
          %768 = vmatpush.msra.mxu0 %v672
          %769 = vmatpush.msra.mxu0 %v670
          %770 = vmatpush.msra.mxu0 %v668
          %771 = vmatpush.msra.mxu0 %v666
          %772 = vmatpush.msra.mxu0 %v664
          %773 = vmatpush.msra.mxu0 %v662
          %774 = vmatpush.msra.mxu0 %v660
          %775 = vmatpush.msra.mxu0 %v658
          %776 = vmatpush.msra.mxu0 %v656
          %777 = vmatmul.f32.gmra.mxu0 %v655
          %v778 = vpop.f32.mrf.mxu0
          %v779 = vadd.f32 %v739, %v778
          %780 = vdwg.mxu0
          %781 = vmatpush.msra.mxu0 %v687
          %782 = vmatpush.msra.mxu0 %v685
          %783 = vmatpush.msra.mxu0 %v683
          %784 = vmatpush.msra.mxu0 %v681
          %785 = vmatpush.msra.mxu0 %v679
          %786 = vmatpush.msra.mxu0 %v677
          %787 = vmatpush.msra.mxu0 %v675
          %788 = vmatpush.msra.mxu0 %v673
          %789 = vmatpush.msra.mxu0 %v671
          %790 = vmatpush.msra.mxu0 %v669
          %791 = vmatpush.msra.mxu0 %v667
          %792 = vmatpush.msra.mxu0 %v665
          %793 = vmatpush.msra.mxu0 %v663
          %794 = vmatpush.msra.mxu0 %v661
          %795 = vmatpush.msra.mxu0 %v659
          %796 = vmatpush.msra.mxu0 %v657
          %797 = vmatmul.f32.gmra.mxu0 %v655
          %v798 = vpop.f32.mrf.mxu0
          %v799 = vadd.f32 %v759, %v798
          %800 = vdwg.mxu0
          %v801 = vld [vmem:[%s8] sm:$0x3]
          %v803 = vperm.slane %v801, 0
          %v804 = vperm.slane %v801, 1
          %v807 = vadd.f32 %v779, %v803
          %v808 = vadd.f32 %v799, %v804
          %vm809 = vcmp.gt.f32.partialorder %v807, 20.0
          %v810 = vmin.f32 %v807, 20.0
          %v811 = vmul.f32 %v810, 1.442695
          %v812 = vpow.pop %v811
          %v813 = vadd.f32 %v812, 1.0
          %v814 = vlog2.pop %v813
          %v815 = vmul.f32 %v814, 0.6931472
          %v816 = vsel %vm809, %v807, %v815
          %v817 = vmax.f32 %v816, 0.1
          %v818 = vmin.f32 %v817, 100.0
          %v819 = vrcp.pop %v818
          %v820 = vmul.f32 %v818, %v819
          %v821 = vsub.f32 1.0, %v820
          %v822 = vmul.f32 %v819, %v821
          %v823 = vadd.f32 %v819, %v822
          %vm824 = vweird.f32 %v818
          %vm825 = vweird.f32 %v819
          %vm826 = vmor %vm824, %vm825
          %v827 = vsel %vm826, %v819, %v823
          %v828 = vand.u32 2147483647, %v818
          %vm829 = vcmp.eq.f32.partialorder %v828, 8.507059e+37
          %v830 = vand.u32 %v818, 2147483648
          %v831 = vor.u32 1.1754944e-38, %v830
          %v832 = vsel %vm829, %v831, %v827
          %v833 = vmul.f32 1.0, %v832
          %v834 = vadd.f32 %v833, 1.0
          %v835 = vsub.f32 %v834, 1.0
          %v836 = vadd.f32 %v835, 1.0
          %v837 = vrcp.pop %v836
          %v838 = vmul.f32 %v836, %v837
          %v839 = vsub.f32 1.0, %v838
          %v840 = vmul.f32 %v837, %v839
          %v841 = vadd.f32 %v837, %v840
          %vm842 = vweird.f32 %v836
          %vm843 = vweird.f32 %v837
          %vm844 = vmor %vm842, %vm843
          %v845 = vsel %vm844, %v837, %v841
          %v846 = vand.u32 2147483647, %v836
          %vm847 = vcmp.eq.f32.partialorder %v846, 8.507059e+37
          %v848 = vand.u32 %v836, 2147483648
          %v849 = vor.u32 1.1754944e-38, %v848
          %v850 = vsel %vm847, %v849, %v845
          %v851 = vmul.f32 676.5204, %v850
          %v852 = vadd.f32 %v851, 1.0
          %v853 = vadd.f32 %v835, 2.0
          %v854 = vrcp.pop %v853
          %v855 = vmul.f32 %v853, %v854
          %v856 = vsub.f32 1.0, %v855
          %v857 = vmul.f32 %v854, %v856
          %v858 = vadd.f32 %v854, %v857
          %vm859 = vweird.f32 %v853
          %vm860 = vweird.f32 %v854
          %vm861 = vmor %vm859, %vm860
          %v862 = vsel %vm861, %v854, %v858
          %v863 = vand.u32 2147483647, %v853
          %vm864 = vcmp.eq.f32.partialorder %v863, 8.507059e+37
          %v865 = vand.u32 %v853, 2147483648
          %v866 = vor.u32 1.1754944e-38, %v865
          %v867 = vsel %vm864, %v866, %v862
          %v868 = vmul.f32 -1259.1392, %v867
          %v869 = vadd.f32 %v852, %v868
          %v870 = vadd.f32 %v835, 3.0
          %v871 = vrcp.pop %v870
          %v872 = vmul.f32 %v870, %v871
          %v873 = vsub.f32 1.0, %v872
          %v874 = vmul.f32 %v871, %v873
          %v875 = vadd.f32 %v871, %v874
          %vm876 = vweird.f32 %v870
          %vm877 = vweird.f32 %v871
          %vm878 = vmor %vm876, %vm877
          %v879 = vsel %vm878, %v871, %v875
          %v880 = vand.u32 2147483647, %v870
          %vm881 = vcmp.eq.f32.partialorder %v880, 8.507059e+37
          %v882 = vand.u32 %v870, 2147483648
          %v883 = vor.u32 1.1754944e-38, %v882
          %v884 = vsel %vm881, %v883, %v879
          %v885 = vmul.f32 771.3234, %v884
          %v886 = vadd.f32 %v869, %v885
          %v887 = vadd.f32 %v835, 4.0
          %v888 = vrcp.pop %v887
          %v889 = vmul.f32 %v887, %v888
          %v890 = vsub.f32 1.0, %v889
          %v891 = vmul.f32 %v888, %v890
          %v892 = vadd.f32 %v888, %v891
          %vm893 = vweird.f32 %v887
          %vm894 = vweird.f32 %v888
          %vm895 = vmor %vm893, %vm894
          %v896 = vsel %vm895, %v888, %v892
          %v897 = vand.u32 2147483647, %v887
          %vm898 = vcmp.eq.f32.partialorder %v897, 8.507059e+37
          %v899 = vand.u32 %v887, 2147483648
          %v900 = vor.u32 1.1754944e-38, %v899
          %v901 = vsel %vm898, %v900, %v896
          %v902 = vmul.f32 -176.61504, %v901
          %v903 = vadd.f32 %v886, %v902
          %v904 = vadd.f32 %v835, 5.0
          %v905 = vrcp.pop %v904
          %v906 = vmul.f32 %v904, %v905
          %v907 = vsub.f32 1.0, %v906
          %v908 = vmul.f32 %v905, %v907
          %v909 = vadd.f32 %v905, %v908
          %vm910 = vweird.f32 %v904
          %vm911 = vweird.f32 %v905
          %vm912 = vmor %vm910, %vm911
          %v913 = vsel %vm912, %v905, %v909
          %v914 = vand.u32 2147483647, %v904
          %vm915 = vcmp.eq.f32.partialorder %v914, 8.507059e+37
          %v916 = vand.u32 %v904, 2147483648
          %v917 = vor.u32 1.1754944e-38, %v916
          %v918 = vsel %vm915, %v917, %v913
          %v919 = vmul.f32 12.507343, %v918
          %v920 = vadd.f32 %v903, %v919
          %v921 = vadd.f32 %v835, 6.0
          %v922 = vrcp.pop %v921
          %v923 = vmul.f32 %v921, %v922
          %v924 = vsub.f32 1.0, %v923
          %v925 = vmul.f32 %v922, %v924
          %v926 = vadd.f32 %v922, %v925
          %vm927 = vweird.f32 %v921
          %vm928 = vweird.f32 %v922
          %vm929 = vmor %vm927, %vm928
          %v930 = vsel %vm929, %v922, %v926
          %v931 = vand.u32 2147483647, %v921
          %vm932 = vcmp.eq.f32.partialorder %v931, 8.507059e+37
          %v933 = vand.u32 %v921, 2147483648
          %v934 = vor.u32 1.1754944e-38, %v933
          %v935 = vsel %vm932, %v934, %v930
          %v936 = vmul.f32 -0.1385711, %v935
          %v937 = vadd.f32 %v920, %v936
          %v938 = vadd.f32 %v835, 7.0
          %v939 = vrcp.pop %v938
          %v940 = vmul.f32 %v938, %v939
          %v941 = vsub.f32 1.0, %v940
          %v942 = vmul.f32 %v939, %v941
          %v943 = vadd.f32 %v939, %v942
          %vm944 = vweird.f32 %v938
          %vm945 = vweird.f32 %v939
          %vm946 = vmor %vm944, %vm945
          %v947 = vsel %vm946, %v939, %v943
          %v948 = vand.u32 2147483647, %v938
          %vm949 = vcmp.eq.f32.partialorder %v948, 8.507059e+37
          %v950 = vand.u32 %v938, 2147483648
          %v951 = vor.u32 1.1754944e-38, %v950
          %v952 = vsel %vm949, %v951, %v947
          %v953 = vmul.f32 9.984369e-06, %v952
          %v954 = vadd.f32 %v937, %v953
          %v955 = vadd.f32 %v835, 8.0
          %v956 = vrcp.pop %v955
          %v957 = vmul.f32 %v955, %v956
          %v958 = vsub.f32 1.0, %v957
          %v959 = vmul.f32 %v956, %v958
          %v960 = vadd.f32 %v956, %v959
          %vm961 = vweird.f32 %v955
          %vm962 = vweird.f32 %v956
          %vm963 = vmor %vm961, %vm962
          %v964 = vsel %vm963, %v956, %v960
          %v965 = vand.u32 2147483647, %v955
          %vm966 = vcmp.eq.f32.partialorder %v965, 8.507059e+37
          %v967 = vand.u32 %v955, 2147483648
          %v968 = vor.u32 1.1754944e-38, %v967
          %v969 = vsel %vm966, %v968, %v964
          %v970 = vmul.f32 1.5056327e-07, %v969
          %v971 = vadd.f32 %v954, %v970
          %v972 = vadd.f32 %v938, 0.5
          %v973 = vadd.f32 %v835, 0.5
          %v974 = vlog2.pop %v972
          %v975 = vmul.f32 %v974, 0.6931472
          %v976 = vmul.f32 %v973, %v975
          %v977 = vadd.f32 %v976, 0.9189385
          %v978 = vsub.f32 %v977, %v972
          %v979 = vlog2.pop %v971
          %v980 = vmul.f32 %v979, 0.6931472
          %v981 = vadd.f32 %v978, %v980
          %v982 = vmul.f32 %v981, 1.442695
          %v983 = vpow.pop %v982
          %vm984 = vcmp.gt.f32.partialorder %v808, 20.0
          %v985 = vmin.f32 %v808, 20.0
          %v986 = vmul.f32 %v985, 1.442695
          %v987 = vpow.pop %v986
          %v988 = vadd.f32 %v987, 1.0
          %v989 = vlog2.pop %v988
          %v990 = vmul.f32 %v989, 0.6931472
          %v991 = vsel %vm984, %v808, %v990
          %v992 = vrcp.pop %v983
          %v993 = vmul.f32 %v983, %v992
          %v994 = vsub.f32 1.0, %v993
          %v995 = vmul.f32 %v992, %v994
          %v996 = vadd.f32 %v992, %v995
          %vm997 = vweird.f32 %v983
          %vm998 = vweird.f32 %v992
          %vm999 = vmor %vm997, %vm998
          %v1000 = vsel %vm999, %v992, %v996
          %v1001 = vand.u32 2147483647, %v983
          %vm1002 = vcmp.eq.f32.partialorder %v1001, 8.507059e+37
          %v1003 = vand.u32 %v983, 2147483648
          %v1004 = vor.u32 1.1754944e-38, %v1003
          %v1005 = vsel %vm1002, %v1004, %v1000
          %v1006 = vmul.f32 %v991, %v1005
          %v1007 = vmax.f32 %v1006, 1e-30
          %v1008 = vmin.f32 %v1007, 9999.0
          %1009 = vst [vmem:[#allocation2] sm:$0xff] %v833
          %1010 = vst [vmem:[#allocation3] sm:$0xff] %v1008
          %1011 = vst [vmem:[#allocation4] sm:$0xff] %v983
          %1012 = vst [vmem:[#allocation5] sm:$0xff] 0.0
        $region76: #{sawtooth_layer_forward.1} parent=71 // pred_fallthru
          _
        %v1013 = vld [vmem:[#allocation2] sm:$0xff]
        %v1014 = vld [vmem:[#allocation3] sm:$0xff]
        %v1015 = vld [vmem:[%s526] sm:$0xff]
        %v1016 = vld [vmem:[%s526 + $0x8] sm:$0xff]
        %v1017 = vld [vmem:[%s526 + $0x10] sm:$0xff]
        %v1018 = vld [vmem:[%s526 + $0x18] sm:$0xff]
        %v1019 = vld [vmem:[%s526 + $0x20] sm:$0xff]
        %v1020 = vld [vmem:[%s526 + $0x28] sm:$0xff]
        %v1021 = vld [vmem:[%s526 + $0x30] sm:$0xff]
        %v1022 = vld [vmem:[%s526 + $0x38] sm:$0xff]
        %v1023 = vld [vmem:[%s526 + $0x40] sm:$0xff]
        %v1024 = vld [vmem:[%s526 + $0x48] sm:$0xff]
        %v1025 = vsub.f32 1.0, %v1015
        %v1026 = vsub.f32 1.0, %v1016
        %v1027 = vsub.f32 1.0, %v1017
        %v1028 = vsub.f32 1.0, %v1018
        %v1029 = vsub.f32 1.0, %v1019
        %v1030 = vsub.f32 1.0, %v1020
        %v1031 = vsub.f32 1.0, %v1021
        %v1032 = vsub.f32 1.0, %v1022
        %v1033 = vsub.f32 1.0, %v1023
        %v1034 = vsub.f32 1.0, %v1024
        %v1035 = vmax.f32 %v1025, 1e-30
        %v1036 = vmax.f32 %v1026, 1e-30
        %v1037 = vmax.f32 %v1027, 1e-30
        %v1038 = vmax.f32 %v1028, 1e-30
        %v1039 = vmax.f32 %v1029, 1e-30
        %v1040 = vmax.f32 %v1030, 1e-30
        %v1041 = vmax.f32 %v1031, 1e-30
        %v1042 = vmax.f32 %v1032, 1e-30
        %v1043 = vmax.f32 %v1033, 1e-30
        %v1044 = vmax.f32 %v1034, 1e-30
        %v1045 = vlog2.pop %v1035
        %v1046 = vmul.f32 %v1045, 0.6931472
        %v1047 = vlog2.pop %v1036
        %v1048 = vmul.f32 %v1047, 0.6931472
        %v1049 = vlog2.pop %v1037
        %v1050 = vmul.f32 %v1049, 0.6931472
        %v1051 = vlog2.pop %v1038
        %v1052 = vmul.f32 %v1051, 0.6931472
        %v1053 = vlog2.pop %v1039
        %v1054 = vmul.f32 %v1053, 0.6931472
        %v1055 = vlog2.pop %v1040
        %v1056 = vmul.f32 %v1055, 0.6931472
        %v1057 = vlog2.pop %v1041
        %v1058 = vmul.f32 %v1057, 0.6931472
        %v1059 = vlog2.pop %v1042
        %v1060 = vmul.f32 %v1059, 0.6931472
        %v1061 = vlog2.pop %v1043
        %v1062 = vmul.f32 %v1061, 0.6931472
        %v1063 = vlog2.pop %v1044
        %v1064 = vmul.f32 %v1063, 0.6931472
        %v1065 = vsub.f32 0.0, %v1046
        %v1066 = vsub.f32 0.0, %v1048
        %v1067 = vsub.f32 0.0, %v1050
        %v1068 = vsub.f32 0.0, %v1052
        %v1069 = vsub.f32 0.0, %v1054
        %v1070 = vsub.f32 0.0, %v1056
        %v1071 = vsub.f32 0.0, %v1058
        %v1072 = vsub.f32 0.0, %v1060
        %v1073 = vsub.f32 0.0, %v1062
        %v1074 = vsub.f32 0.0, %v1064
        %v1075 = vmax.f32 %v1065, 1e-30
        %v1076 = vmax.f32 %v1066, 1e-30
        %v1077 = vmax.f32 %v1067, 1e-30
        %v1078 = vmax.f32 %v1068, 1e-30
        %v1079 = vmax.f32 %v1069, 1e-30
        %v1080 = vmax.f32 %v1070, 1e-30
        %v1081 = vmax.f32 %v1071, 1e-30
        %v1082 = vmax.f32 %v1072, 1e-30
        %v1083 = vmax.f32 %v1073, 1e-30
        %v1084 = vmax.f32 %v1074, 1e-30
        %v1085 = vlog2.pop %v1075
        %v1086 = vmul.f32 %v1085, 0.6931472
        %v1087 = vlog2.pop %v1076
        %v1088 = vmul.f32 %v1087, 0.6931472
        %v1089 = vlog2.pop %v1077
        %v1090 = vmul.f32 %v1089, 0.6931472
        %v1091 = vlog2.pop %v1078
        %v1092 = vmul.f32 %v1091, 0.6931472
        %v1093 = vlog2.pop %v1079
        %v1094 = vmul.f32 %v1093, 0.6931472
        %v1095 = vlog2.pop %v1080
        %v1096 = vmul.f32 %v1095, 0.6931472
        %v1097 = vlog2.pop %v1081
        %v1098 = vmul.f32 %v1097, 0.6931472
        %v1099 = vlog2.pop %v1082
        %v1100 = vmul.f32 %v1099, 0.6931472
        %v1101 = vlog2.pop %v1083
        %v1102 = vmul.f32 %v1101, 0.6931472
        %v1103 = vlog2.pop %v1084
        %v1104 = vmul.f32 %v1103, 0.6931472
        %vm1105 = vcmp.gt.f32.partialorder %v1065, 0.0
        %vm1106 = vcmp.gt.f32.partialorder %v1066, 0.0
        %vm1107 = vcmp.gt.f32.partialorder %v1067, 0.0
        %vm1108 = vcmp.gt.f32.partialorder %v1068, 0.0
        %vm1109 = vcmp.gt.f32.partialorder %v1069, 0.0
        %vm1110 = vcmp.gt.f32.partialorder %v1070, 0.0
        %vm1111 = vcmp.gt.f32.partialorder %v1071, 0.0
        %vm1112 = vcmp.gt.f32.partialorder %v1072, 0.0
        %vm1113 = vcmp.gt.f32.partialorder %v1073, 0.0
        %vm1114 = vcmp.gt.f32.partialorder %v1074, 0.0
        %v1115 = vmul.f32 %v1013, %v1086
        %v1116 = vmul.f32 %v1013, %v1088
        %v1117 = vmul.f32 %v1013, %v1090
        %v1118 = vmul.f32 %v1013, %v1092
        %v1119 = vmul.f32 %v1013, %v1094
        %v1120 = vmul.f32 %v1013, %v1096
        %v1121 = vmul.f32 %v1013, %v1098
        %v1122 = vmul.f32 %v1013, %v1100
        %v1123 = vmul.f32 %v1013, %v1102
        %v1124 = vmul.f32 %v1013, %v1104
        %v1125 = vmul.f32 %v1115, 1.442695
        %v1126 = vpow.pop %v1125
        %v1127 = vmul.f32 %v1116, 1.442695
        %v1128 = vpow.pop %v1127
        %v1129 = vmul.f32 %v1117, 1.442695
        %v1130 = vpow.pop %v1129
        %v1131 = vmul.f32 %v1118, 1.442695
        %v1132 = vpow.pop %v1131
        %v1133 = vmul.f32 %v1119, 1.442695
        %v1134 = vpow.pop %v1133
        %v1135 = vmul.f32 %v1120, 1.442695
        %v1136 = vpow.pop %v1135
        %v1137 = vmul.f32 %v1121, 1.442695
        %v1138 = vpow.pop %v1137
        %v1139 = vmul.f32 %v1122, 1.442695
        %v1140 = vpow.pop %v1139
        %v1141 = vmul.f32 %v1123, 1.442695
        %v1142 = vpow.pop %v1141
        %v1143 = vmul.f32 %v1124, 1.442695
        %v1144 = vpow.pop %v1143
        %v1145 = vsel %vm1105, %v1126, 0.0
        %v1146 = vsel %vm1106, %v1128, 0.0
        %v1147 = vsel %vm1107, %v1130, 0.0
        %v1148 = vsel %vm1108, %v1132, 0.0
        %v1149 = vsel %vm1109, %v1134, 0.0
        %v1150 = vsel %vm1110, %v1136, 0.0
        %v1151 = vsel %vm1111, %v1138, 0.0
        %v1152 = vsel %vm1112, %v1140, 0.0
        %v1153 = vsel %vm1113, %v1142, 0.0
        %v1154 = vsel %vm1114, %v1144, 0.0
        %v1155 = vmul.f32 %v1014, %v1145
        %v1156 = vmul.f32 %v1014, %v1146
        %v1157 = vmul.f32 %v1014, %v1147
        %v1158 = vmul.f32 %v1014, %v1148
        %v1159 = vmul.f32 %v1014, %v1149
        %v1160 = vmul.f32 %v1014, %v1150
        %v1161 = vmul.f32 %v1014, %v1151
        %v1162 = vmul.f32 %v1014, %v1152
        %v1163 = vmul.f32 %v1014, %v1153
        %v1164 = vmul.f32 %v1014, %v1154
        %v1165 = vmax.f32 %v1155, 1e-30
        %v1166 = vmax.f32 %v1156, 1e-30
        %v1167 = vmax.f32 %v1157, 1e-30
        %v1168 = vmax.f32 %v1158, 1e-30
        %v1169 = vmax.f32 %v1159, 1e-30
        %v1170 = vmax.f32 %v1160, 1e-30
        %v1171 = vmax.f32 %v1161, 1e-30
        %v1172 = vmax.f32 %v1162, 1e-30
        %v1173 = vmax.f32 %v1163, 1e-30
        %v1174 = vmax.f32 %v1164, 1e-30
        %v1175 = vmin.f32 %v1165, 1000.0
        %v1176 = vmin.f32 %v1166, 1000.0
        %v1177 = vmin.f32 %v1167, 1000.0
        %v1178 = vmin.f32 %v1168, 1000.0
        %v1179 = vmin.f32 %v1169, 1000.0
        %v1180 = vmin.f32 %v1170, 1000.0
        %v1181 = vmin.f32 %v1171, 1000.0
        %v1182 = vmin.f32 %v1172, 1000.0
        %v1183 = vmin.f32 %v1173, 1000.0
        %v1184 = vmin.f32 %v1174, 1000.0
        %v1185 = vld [vmem:[#allocation5] sm:$0xff]
        %v1186 = vadd.f32 %v1175, %v1176
        %v1187 = vadd.f32 %v1186, %v1177
        %v1188 = vadd.f32 %v1187, %v1178
        %v1189 = vadd.f32 %v1188, %v1179
        %v1190 = vadd.f32 %v1189, %v1180
        %v1191 = vadd.f32 %v1190, %v1181
        %v1192 = vadd.f32 %v1191, %v1182
        %v1193 = vadd.f32 %v1192, %v1183
        %v1194 = vadd.f32 %v1193, %v1184
        %v1195 = vadd.f32 %v1185, %v1194
        %1196 = vst [vmem:[#allocation5] sm:$0xff] %v1195
        %p1197 = scmp.eq.s32.totalorder %s32, 4
        // Predicated region
        $region77: #{sawtooth_layer_forward.1} parent=71 // pred_check
          %p1198 = pneg %p1197
        $region78: #{sawtooth_layer_forward.1} parent=71 // pred_check_branch
          %1200 = sbr.rel (%p1198) target = $region80
        $region79: #{sawtooth_layer_forward.1} parent=71 // pred_region
          %v1201 = vld [vmem:[#allocation5] sm:$0xff]
          %v1202 = vmul.f32 %v1201, 0.02
          %1203 = vst [vmem:[#allocation11] sm:$0xff] %v1202
          %v1204 = vld [vmem:[%s10] sm:$0xff]
          %v1205 = vld [vmem:[%s10 + $0x8] sm:$0xff]
          %v1206 = vld [vmem:[%s10 + $0x10] sm:$0xff]
          %v1207 = vld [vmem:[%s10 + $0x18] sm:$0xff]
          %v1208 = vld [vmem:[%s10 + $0x20] sm:$0xff]
          %v1209 = vld [vmem:[%s10 + $0x28] sm:$0xff]
          %v1210 = vld [vmem:[%s10 + $0x30] sm:$0xff]
          %v1211 = vld [vmem:[%s10 + $0x38] sm:$0xff]
          %v1212 = vld [vmem:[%s10 + $0x40] sm:$0xff]
          %v1213 = vld [vmem:[%s10 + $0x48] sm:$0xff]
          %v1214 = vld [vmem:[%s10 + $0x50] sm:$0xff]
          %v1215 = vld [vmem:[%s10 + $0x58] sm:$0xff]
          %v1216 = vld [vmem:[%s10 + $0x60] sm:$0xff]
          %v1217 = vld [vmem:[%s10 + $0x68] sm:$0xff]
          %v1218 = vld [vmem:[%s10 + $0x70] sm:$0xff]
          %v1219 = vld [vmem:[%s10 + $0x78] sm:$0xff]
          %v1220 = vld [vmem:[%s11] sm:$0xff]
          %v1221 = vld [vmem:[%s11 + $0x8] sm:$0xff]
          %v1222 = vld [vmem:[%s11 + $0x10] sm:$0xff]
          %v1223 = vld [vmem:[%s11 + $0x18] sm:$0xff]
          %v1224 = vld [vmem:[%s11 + $0x20] sm:$0xff]
          %v1225 = vld [vmem:[%s11 + $0x28] sm:$0xff]
          %v1226 = vld [vmem:[%s11 + $0x30] sm:$0xff]
          %v1227 = vld [vmem:[%s11 + $0x38] sm:$0xff]
          %v1228 = vld [vmem:[%s11 + $0x40] sm:$0xff]
          %v1229 = vld [vmem:[%s11 + $0x48] sm:$0xff]
          %v1230 = vld [vmem:[%s11 + $0x50] sm:$0xff]
          %v1231 = vld [vmem:[%s11 + $0x58] sm:$0xff]
          %v1232 = vld [vmem:[%s11 + $0x60] sm:$0xff]
          %v1233 = vld [vmem:[%s11 + $0x68] sm:$0xff]
          %v1234 = vld [vmem:[%s11 + $0x70] sm:$0xff]
          %v1235 = vld [vmem:[%s11 + $0x78] sm:$0xff]
          %v1236 = vld [vmem:[%s11 + $0x80] sm:$0xff]
          %v1237 = vld [vmem:[%s11 + $0x88] sm:$0xff]
          %v1238 = vld [vmem:[%s11 + $0x90] sm:$0xff]
          %v1239 = vld [vmem:[%s11 + $0x98] sm:$0xff]
          %v1240 = vld [vmem:[%s11 + $0xa0] sm:$0xff]
          %v1241 = vld [vmem:[%s11 + $0xa8] sm:$0xff]
          %v1242 = vld [vmem:[%s11 + $0xb0] sm:$0xff]
          %v1243 = vld [vmem:[%s11 + $0xb8] sm:$0xff]
          %v1244 = vld [vmem:[%s11 + $0xc0] sm:$0xff]
          %v1245 = vld [vmem:[%s11 + $0xc8] sm:$0xff]
          %v1246 = vld [vmem:[%s11 + $0xd0] sm:$0xff]
          %v1247 = vld [vmem:[%s11 + $0xd8] sm:$0xff]
          %v1248 = vld [vmem:[%s11 + $0xe0] sm:$0xff]
          %v1249 = vld [vmem:[%s11 + $0xe8] sm:$0xff]
          %v1250 = vld [vmem:[%s11 + $0xf0] sm:$0xff]
          %v1251 = vld [vmem:[%s11 + $0xf8] sm:$0xff]
          %1252 = vmatpush.msra.mxu0 %v1250
          %1253 = vmatpush.msra.mxu0 %v1248
          %1254 = vmatpush.msra.mxu0 %v1246
          %1255 = vmatpush.msra.mxu0 %v1244
          %1256 = vmatpush.msra.mxu0 %v1242
          %1257 = vmatpush.msra.mxu0 %v1240
          %1258 = vmatpush.msra.mxu0 %v1238
          %1259 = vmatpush.msra.mxu0 %v1236
          %1260 = vmatpush.msra.mxu0 %v1234
          %1261 = vmatpush.msra.mxu0 %v1232
          %1262 = vmatpush.msra.mxu0 %v1230
          %1263 = vmatpush.msra.mxu0 %v1228
          %1264 = vmatpush.msra.mxu0 %v1226
          %1265 = vmatpush.msra.mxu0 %v1224
          %1266 = vmatpush.msra.mxu0 %v1222
          %1267 = vmatpush.msra.mxu0 %v1220
          %1268 = vmatmul.f32.gmra.mxu0 %v1204
          %v1269 = vpop.f32.mrf.mxu0
          %v1270 = vadd.f32 1e-30, %v1269
          %1271 = vmatmul.f32.gmra.mxu0 %v1205
          %v1272 = vpop.f32.mrf.mxu0
          %v1273 = vadd.f32 1e-30, %v1272
          %1274 = vmatmul.f32.gmra.mxu0 %v1206
          %v1275 = vpop.f32.mrf.mxu0
          %v1276 = vadd.f32 1e-30, %v1275
          %1277 = vmatmul.f32.gmra.mxu0 %v1207
          %v1278 = vpop.f32.mrf.mxu0
          %v1279 = vadd.f32 1e-30, %v1278
          %1280 = vmatmul.f32.gmra.mxu0 %v1208
          %v1281 = vpop.f32.mrf.mxu0
          %v1282 = vadd.f32 1e-30, %v1281
          %1283 = vmatmul.f32.gmra.mxu0 %v1209
          %v1284 = vpop.f32.mrf.mxu0
          %v1285 = vadd.f32 1e-30, %v1284
          %1286 = vmatmul.f32.gmra.mxu0 %v1210
          %v1287 = vpop.f32.mrf.mxu0
          %v1288 = vadd.f32 1e-30, %v1287
          %1289 = vmatmul.f32.gmra.mxu0 %v1211
          %v1290 = vpop.f32.mrf.mxu0
          %v1291 = vadd.f32 1e-30, %v1290
          %1292 = vmatmul.f32.gmra.mxu0 %v1212
          %v1293 = vpop.f32.mrf.mxu0
          %v1294 = vadd.f32 1e-30, %v1293
          %1295 = vmatmul.f32.gmra.mxu0 %v1213
          %v1296 = vpop.f32.mrf.mxu0
          %v1297 = vadd.f32 1e-30, %v1296
          %1298 = vmatmul.f32.gmra.mxu0 %v1214
          %v1299 = vpop.f32.mrf.mxu0
          %v1300 = vadd.f32 1e-30, %v1299
          %1301 = vmatmul.f32.gmra.mxu0 %v1215
          %v1302 = vpop.f32.mrf.mxu0
          %v1303 = vadd.f32 1e-30, %v1302
          %1304 = vmatmul.f32.gmra.mxu0 %v1216
          %v1305 = vpop.f32.mrf.mxu0
          %v1306 = vadd.f32 1e-30, %v1305
          %1307 = vmatmul.f32.gmra.mxu0 %v1217
          %v1308 = vpop.f32.mrf.mxu0
          %v1309 = vadd.f32 1e-30, %v1308
          %1310 = vmatmul.f32.gmra.mxu0 %v1218
          %v1311 = vpop.f32.mrf.mxu0
          %v1312 = vadd.f32 1e-30, %v1311
          %1313 = vmatmul.f32.gmra.mxu0 %v1219
          %v1314 = vpop.f32.mrf.mxu0
          %v1315 = vadd.f32 1e-30, %v1314
          %1316 = vdwg.mxu0
          %1317 = vmatpush.msra.mxu0 %v1251
          %1318 = vmatpush.msra.mxu0 %v1249
          %1319 = vmatpush.msra.mxu0 %v1247
          %1320 = vmatpush.msra.mxu0 %v1245
          %1321 = vmatpush.msra.mxu0 %v1243
          %1322 = vmatpush.msra.mxu0 %v1241
          %1323 = vmatpush.msra.mxu0 %v1239
          %1324 = vmatpush.msra.mxu0 %v1237
          %1325 = vmatpush.msra.mxu0 %v1235
          %1326 = vmatpush.msra.mxu0 %v1233
          %1327 = vmatpush.msra.mxu0 %v1231
          %1328 = vmatpush.msra.mxu0 %v1229
          %1329 = vmatpush.msra.mxu0 %v1227
          %1330 = vmatpush.msra.mxu0 %v1225
          %1331 = vmatpush.msra.mxu0 %v1223
          %1332 = vmatpush.msra.mxu0 %v1221
          %1333 = vmatmul.f32.gmra.mxu0 %v1204
          %v1334 = vpop.f32.mrf.mxu0
          %v1335 = vadd.f32 1e-30, %v1334
          %1336 = vmatmul.f32.gmra.mxu0 %v1205
          %v1337 = vpop.f32.mrf.mxu0
          %v1338 = vadd.f32 1e-30, %v1337
          %1339 = vmatmul.f32.gmra.mxu0 %v1206
          %v1340 = vpop.f32.mrf.mxu0
          %v1341 = vadd.f32 1e-30, %v1340
          %1342 = vmatmul.f32.gmra.mxu0 %v1207
          %v1343 = vpop.f32.mrf.mxu0
          %v1344 = vadd.f32 1e-30, %v1343
          %1345 = vmatmul.f32.gmra.mxu0 %v1208
          %v1346 = vpop.f32.mrf.mxu0
          %v1347 = vadd.f32 1e-30, %v1346
          %1348 = vmatmul.f32.gmra.mxu0 %v1209
          %v1349 = vpop.f32.mrf.mxu0
          %v1350 = vadd.f32 1e-30, %v1349
          %1351 = vmatmul.f32.gmra.mxu0 %v1210
          %v1352 = vpop.f32.mrf.mxu0
          %v1353 = vadd.f32 1e-30, %v1352
          %1354 = vmatmul.f32.gmra.mxu0 %v1211
          %v1355 = vpop.f32.mrf.mxu0
          %v1356 = vadd.f32 1e-30, %v1355
          %1357 = vmatmul.f32.gmra.mxu0 %v1212
          %v1358 = vpop.f32.mrf.mxu0
          %v1359 = vadd.f32 1e-30, %v1358
          %1360 = vmatmul.f32.gmra.mxu0 %v1213
          %v1361 = vpop.f32.mrf.mxu0
          %v1362 = vadd.f32 1e-30, %v1361
          %1363 = vmatmul.f32.gmra.mxu0 %v1214
          %v1364 = vpop.f32.mrf.mxu0
          %v1365 = vadd.f32 1e-30, %v1364
          %1366 = vmatmul.f32.gmra.mxu0 %v1215
          %v1367 = vpop.f32.mrf.mxu0
          %v1368 = vadd.f32 1e-30, %v1367
          %1369 = vmatmul.f32.gmra.mxu0 %v1216
          %v1370 = vpop.f32.mrf.mxu0
          %v1371 = vadd.f32 1e-30, %v1370
          %1372 = vmatmul.f32.gmra.mxu0 %v1217
          %v1373 = vpop.f32.mrf.mxu0
          %v1374 = vadd.f32 1e-30, %v1373
          %1375 = vmatmul.f32.gmra.mxu0 %v1218
          %v1376 = vpop.f32.mrf.mxu0
          %v1377 = vadd.f32 1e-30, %v1376
          %1378 = vmatmul.f32.gmra.mxu0 %v1219
          %v1379 = vpop.f32.mrf.mxu0
          %v1380 = vadd.f32 1e-30, %v1379
          %1381 = vdwg.mxu0
          %v1382 = vmax.f32 %v1270, %v1335
          %1383 = vmax.xlane.f32.xlu0 %v1382
          %v1384 = vpop.xlane.xlu0 %1383
          %v1385 = vmax.f32 %v1273, %v1338
          %1386 = vmax.xlane.f32.xlu0 %v1385
          %v1387 = vpop.xlane.xlu0 %1386
          %v1388 = vmax.f32 %v1276, %v1341
          %1389 = vmax.xlane.f32.xlu0 %v1388
          %v1390 = vpop.xlane.xlu0 %1389
          %v1391 = vmax.f32 %v1279, %v1344
          %1392 = vmax.xlane.f32.xlu0 %v1391
          %v1393 = vpop.xlane.xlu0 %1392
          %v1394 = vmax.f32 %v1282, %v1347
          %1395 = vmax.xlane.f32.xlu0 %v1394
          %v1396 = vpop.xlane.xlu0 %1395
          %v1397 = vmax.f32 %v1285, %v1350
          %1398 = vmax.xlane.f32.xlu0 %v1397
          %v1399 = vpop.xlane.xlu0 %1398
          %v1400 = vmax.f32 %v1288, %v1353
          %1401 = vmax.xlane.f32.xlu0 %v1400
          %v1402 = vpop.xlane.xlu0 %1401
          %v1403 = vmax.f32 %v1291, %v1356
          %1404 = vmax.xlane.f32.xlu0 %v1403
          %v1405 = vpop.xlane.xlu0 %1404
          %v1406 = vmax.f32 %v1294, %v1359
          %1407 = vmax.xlane.f32.xlu0 %v1406
          %v1408 = vpop.xlane.xlu0 %1407
          %v1409 = vmax.f32 %v1297, %v1362
          %1410 = vmax.xlane.f32.xlu0 %v1409
          %v1411 = vpop.xlane.xlu0 %1410
          %v1412 = vmax.f32 %v1300, %v1365
          %1413 = vmax.xlane.f32.xlu0 %v1412
          %v1414 = vpop.xlane.xlu0 %1413
          %v1415 = vmax.f32 %v1303, %v1368
          %1416 = vmax.xlane.f32.xlu0 %v1415
          %v1417 = vpop.xlane.xlu0 %1416
          %v1418 = vmax.f32 %v1306, %v1371
          %1419 = vmax.xlane.f32.xlu0 %v1418
          %v1420 = vpop.xlane.xlu0 %1419
          %v1421 = vmax.f32 %v1309, %v1374
          %1422 = vmax.xlane.f32.xlu0 %v1421
          %v1423 = vpop.xlane.xlu0 %1422
          %v1424 = vmax.f32 %v1312, %v1377
          %1425 = vmax.xlane.f32.xlu0 %v1424
          %v1426 = vpop.xlane.xlu0 %1425
          %v1427 = vmax.f32 %v1315, %v1380
          %1428 = vmax.xlane.f32.xlu0 %v1427
          %v1429 = vpop.xlane.xlu0 %1428
          %v1430 = vsub.f32 %v1270, %v1384
          %v1431 = vsub.f32 %v1335, %v1384
          %v1432 = vsub.f32 %v1273, %v1387
          %v1433 = vsub.f32 %v1338, %v1387
          %v1434 = vsub.f32 %v1276, %v1390
          %v1435 = vsub.f32 %v1341, %v1390
          %v1436 = vsub.f32 %v1279, %v1393
          %v1437 = vsub.f32 %v1344, %v1393
          %v1438 = vsub.f32 %v1282, %v1396
          %v1439 = vsub.f32 %v1347, %v1396
          %v1440 = vsub.f32 %v1285, %v1399
          %v1441 = vsub.f32 %v1350, %v1399
          %v1442 = vsub.f32 %v1288, %v1402
          %v1443 = vsub.f32 %v1353, %v1402
          %v1444 = vsub.f32 %v1291, %v1405
          %v1445 = vsub.f32 %v1356, %v1405
          %v1446 = vsub.f32 %v1294, %v1408
          %v1447 = vsub.f32 %v1359, %v1408
          %v1448 = vsub.f32 %v1297, %v1411
          %v1449 = vsub.f32 %v1362, %v1411
          %v1450 = vsub.f32 %v1300, %v1414
          %v1451 = vsub.f32 %v1365, %v1414
          %v1452 = vsub.f32 %v1303, %v1417
          %v1453 = vsub.f32 %v1368, %v1417
          %v1454 = vsub.f32 %v1306, %v1420
          %v1455 = vsub.f32 %v1371, %v1420
          %v1456 = vsub.f32 %v1309, %v1423
          %v1457 = vsub.f32 %v1374, %v1423
          %v1458 = vsub.f32 %v1312, %v1426
          %v1459 = vsub.f32 %v1377, %v1426
          %v1460 = vsub.f32 %v1315, %v1429
          %v1461 = vsub.f32 %v1380, %v1429
          %v1462 = vmul.f32 %v1430, 1.442695
          %v1463 = vpow.pop %v1462
          %v1464 = vmul.f32 %v1431, 1.442695
          %v1465 = vpow.pop %v1464
          %v1466 = vmul.f32 %v1432, 1.442695
          %v1467 = vpow.pop %v1466
          %v1468 = vmul.f32 %v1433, 1.442695
          %v1469 = vpow.pop %v1468
          %v1470 = vmul.f32 %v1434, 1.442695
          %v1471 = vpow.pop %v1470
          %v1472 = vmul.f32 %v1435, 1.442695
          %v1473 = vpow.pop %v1472
          %v1474 = vmul.f32 %v1436, 1.442695
          %v1475 = vpow.pop %v1474
          %v1476 = vmul.f32 %v1437, 1.442695
          %v1477 = vpow.pop %v1476
          %v1478 = vmul.f32 %v1438, 1.442695
          %v1479 = vpow.pop %v1478
          %v1480 = vmul.f32 %v1439, 1.442695
          %v1481 = vpow.pop %v1480
          %v1482 = vmul.f32 %v1440, 1.442695
          %v1483 = vpow.pop %v1482
          %v1484 = vmul.f32 %v1441, 1.442695
          %v1485 = vpow.pop %v1484
          %v1486 = vmul.f32 %v1442, 1.442695
          %v1487 = vpow.pop %v1486
          %v1488 = vmul.f32 %v1443, 1.442695
          %v1489 = vpow.pop %v1488
          %v1490 = vmul.f32 %v1444, 1.442695
          %v1491 = vpow.pop %v1490
          %v1492 = vmul.f32 %v1445, 1.442695
          %v1493 = vpow.pop %v1492
          %v1494 = vmul.f32 %v1446, 1.442695
          %v1495 = vpow.pop %v1494
          %v1496 = vmul.f32 %v1447, 1.442695
          %v1497 = vpow.pop %v1496
          %v1498 = vmul.f32 %v1448, 1.442695
          %v1499 = vpow.pop %v1498
          %v1500 = vmul.f32 %v1449, 1.442695
          %v1501 = vpow.pop %v1500
          %v1502 = vmul.f32 %v1450, 1.442695
          %v1503 = vpow.pop %v1502
          %v1504 = vmul.f32 %v1451, 1.442695
          %v1505 = vpow.pop %v1504
          %v1506 = vmul.f32 %v1452, 1.442695
          %v1507 = vpow.pop %v1506
          %v1508 = vmul.f32 %v1453, 1.442695
          %v1509 = vpow.pop %v1508
          %v1510 = vmul.f32 %v1454, 1.442695
          %v1511 = vpow.pop %v1510
          %v1512 = vmul.f32 %v1455, 1.442695
          %v1513 = vpow.pop %v1512
          %v1514 = vmul.f32 %v1456, 1.442695
          %v1515 = vpow.pop %v1514
          %v1516 = vmul.f32 %v1457, 1.442695
          %v1517 = vpow.pop %v1516
          %v1518 = vmul.f32 %v1458, 1.442695
          %v1519 = vpow.pop %v1518
          %v1520 = vmul.f32 %v1459, 1.442695
          %v1521 = vpow.pop %v1520
          %v1522 = vmul.f32 %v1460, 1.442695
          %v1523 = vpow.pop %v1522
          %v1524 = vmul.f32 %v1461, 1.442695
          %v1525 = vpow.pop %v1524
          %v1526 = vadd.f32 %v1463, %v1465
          %1527 = vadd.xlane.f32.xlu0 %v1526
          %v1528 = vpop.xlane.xlu0 %1527
          %v1529 = vadd.f32 %v1467, %v1469
          %1530 = vadd.xlane.f32.xlu0 %v1529
          %v1531 = vpop.xlane.xlu0 %1530
          %v1532 = vadd.f32 %v1471, %v1473
          %1533 = vadd.xlane.f32.xlu0 %v1532
          %v1534 = vpop.xlane.xlu0 %1533
          %v1535 = vadd.f32 %v1475, %v1477
          %1536 = vadd.xlane.f32.xlu0 %v1535
          %v1537 = vpop.xlane.xlu0 %1536
          %v1538 = vadd.f32 %v1479, %v1481
          %1539 = vadd.xlane.f32.xlu0 %v1538
          %v1540 = vpop.xlane.xlu0 %1539
          %v1541 = vadd.f32 %v1483, %v1485
          %1542 = vadd.xlane.f32.xlu0 %v1541
          %v1543 = vpop.xlane.xlu0 %1542
          %v1544 = vadd.f32 %v1487, %v1489
          %1545 = vadd.xlane.f32.xlu0 %v1544
          %v1546 = vpop.xlane.xlu0 %1545
          %v1547 = vadd.f32 %v1491, %v1493
          %1548 = vadd.xlane.f32.xlu0 %v1547
          %v1549 = vpop.xlane.xlu0 %1548
          %v1550 = vadd.f32 %v1495, %v1497
          %1551 = vadd.xlane.f32.xlu0 %v1550
          %v1552 = vpop.xlane.xlu0 %1551
          %v1553 = vadd.f32 %v1499, %v1501
          %1554 = vadd.xlane.f32.xlu0 %v1553
          %v1555 = vpop.xlane.xlu0 %1554
          %v1556 = vadd.f32 %v1503, %v1505
          %1557 = vadd.xlane.f32.xlu0 %v1556
          %v1558 = vpop.xlane.xlu0 %1557
          %v1559 = vadd.f32 %v1507, %v1509
          %1560 = vadd.xlane.f32.xlu0 %v1559
          %v1561 = vpop.xlane.xlu0 %1560
          %v1562 = vadd.f32 %v1511, %v1513
          %1563 = vadd.xlane.f32.xlu0 %v1562
          %v1564 = vpop.xlane.xlu0 %1563
          %v1565 = vadd.f32 %v1515, %v1517
          %1566 = vadd.xlane.f32.xlu0 %v1565
          %v1567 = vpop.xlane.xlu0 %1566
          %v1568 = vadd.f32 %v1519, %v1521
          %1569 = vadd.xlane.f32.xlu0 %v1568
          %v1570 = vpop.xlane.xlu0 %1569
          %v1571 = vadd.f32 %v1523, %v1525
          %1572 = vadd.xlane.f32.xlu0 %v1571
          %v1573 = vpop.xlane.xlu0 %1572
          %v1574 = vrcp.pop %v1528
          %v1575 = vrcp.pop %v1531
          %v1576 = vrcp.pop %v1534
          %v1577 = vrcp.pop %v1537
          %v1578 = vrcp.pop %v1540
          %v1579 = vrcp.pop %v1543
          %v1580 = vrcp.pop %v1546
          %v1581 = vrcp.pop %v1549
          %v1582 = vrcp.pop %v1552
          %v1583 = vrcp.pop %v1555
          %v1584 = vrcp.pop %v1558
          %v1585 = vrcp.pop %v1561
          %v1586 = vrcp.pop %v1564
          %v1587 = vrcp.pop %v1567
          %v1588 = vrcp.pop %v1570
          %v1589 = vrcp.pop %v1573
          %v1590 = vmul.f32 %v1463, %v1574
          %v1591 = vmul.f32 %v1465, %v1574
          %v1592 = vmul.f32 %v1467, %v1575
          %v1593 = vmul.f32 %v1469, %v1575
          %v1594 = vmul.f32 %v1471, %v1576
          %v1595 = vmul.f32 %v1473, %v1576
          %v1596 = vmul.f32 %v1475, %v1577
          %v1597 = vmul.f32 %v1477, %v1577
          %v1598 = vmul.f32 %v1479, %v1578
          %v1599 = vmul.f32 %v1481, %v1578
          %v1600 = vmul.f32 %v1483, %v1579
          %v1601 = vmul.f32 %v1485, %v1579
          %v1602 = vmul.f32 %v1487, %v1580
          %v1603 = vmul.f32 %v1489, %v1580
          %v1604 = vmul.f32 %v1491, %v1581
          %v1605 = vmul.f32 %v1493, %v1581
          %v1606 = vmul.f32 %v1495, %v1582
          %v1607 = vmul.f32 %v1497, %v1582
          %v1608 = vmul.f32 %v1499, %v1583
          %v1609 = vmul.f32 %v1501, %v1583
          %v1610 = vmul.f32 %v1503, %v1584
          %v1611 = vmul.f32 %v1505, %v1584
          %v1612 = vmul.f32 %v1507, %v1585
          %v1613 = vmul.f32 %v1509, %v1585
          %v1614 = vmul.f32 %v1511, %v1586
          %v1615 = vmul.f32 %v1513, %v1586
          %v1616 = vmul.f32 %v1515, %v1587
          %v1617 = vmul.f32 %v1517, %v1587
          %v1618 = vmul.f32 %v1519, %v1588
          %v1619 = vmul.f32 %v1521, %v1588
          %v1620 = vmul.f32 %v1523, %v1589
          %v1621 = vmul.f32 %v1525, %v1589
          %1622 = vmatpush.msra.mxu0 %v1620
          %1623 = vmatpush.msra.mxu0 %v1618
          %1624 = vmatpush.msra.mxu0 %v1616
          %1625 = vmatpush.msra.mxu0 %v1614
          %1626 = vmatpush.msra.mxu0 %v1612
          %1627 = vmatpush.msra.mxu0 %v1610
          %1628 = vmatpush.msra.mxu0 %v1608
          %1629 = vmatpush.msra.mxu0 %v1606
          %1630 = vmatpush.msra.mxu0 %v1604
          %1631 = vmatpush.msra.mxu0 %v1602
          %1632 = vmatpush.msra.mxu0 %v1600
          %1633 = vmatpush.msra.mxu0 %v1598
          %1634 = vmatpush.msra.mxu0 %v1596
          %1635 = vmatpush.msra.mxu0 %v1594
          %1636 = vmatpush.msra.mxu0 %v1592
          %1637 = vmatpush.msra.mxu0 %v1590
          %1638 = vmatmul.f32.gmra.mxu0 %v1202
          %v1639 = vpop.f32.mrf.mxu0
          %v1640 = vadd.f32 0.0, %v1639
          %1641 = vdwg.mxu0
          %1642 = vmatpush.msra.mxu0 %v1621
          %1643 = vmatpush.msra.mxu0 %v1619
          %1644 = vmatpush.msra.mxu0 %v1617
          %1645 = vmatpush.msra.mxu0 %v1615
          %1646 = vmatpush.msra.mxu0 %v1613
          %1647 = vmatpush.msra.mxu0 %v1611
          %1648 = vmatpush.msra.mxu0 %v1609
          %1649 = vmatpush.msra.mxu0 %v1607
          %1650 = vmatpush.msra.mxu0 %v1605
          %1651 = vmatpush.msra.mxu0 %v1603
          %1652 = vmatpush.msra.mxu0 %v1601
          %1653 = vmatpush.msra.mxu0 %v1599
          %1654 = vmatpush.msra.mxu0 %v1597
          %1655 = vmatpush.msra.mxu0 %v1595
          %1656 = vmatpush.msra.mxu0 %v1593
          %1657 = vmatpush.msra.mxu0 %v1591
          %1658 = vmatmul.f32.gmra.mxu0 %v1202
          %v1659 = vpop.f32.mrf.mxu0
          %v1660 = vadd.f32 0.0, %v1659
          %1661 = vdwg.mxu0
          %1662 = vst [vmem:[%s15] sm:$0xff] %v1590
          %1663 = vst [vmem:[%s15 + $0x8] sm:$0xff] %v1591
          %1664 = vst [vmem:[%s15 + $0x10] sm:$0xff] %v1592
          %1665 = vst [vmem:[%s15 + $0x18] sm:$0xff] %v1593
          %1666 = vst [vmem:[%s15 + $0x20] sm:$0xff] %v1594
          %1667 = vst [vmem:[%s15 + $0x28] sm:$0xff] %v1595
          %1668 = vst [vmem:[%s15 + $0x30] sm:$0xff] %v1596
          %1669 = vst [vmem:[%s15 + $0x38] sm:$0xff] %v1597
          %1670 = vst [vmem:[%s15 + $0x40] sm:$0xff] %v1598
          %1671 = vst [vmem:[%s15 + $0x48] sm:$0xff] %v1599
          %1672 = vst [vmem:[%s15 + $0x50] sm:$0xff] %v1600
          %1673 = vst [vmem:[%s15 + $0x58] sm:$0xff] %v1601
          %1674 = vst [vmem:[%s15 + $0x60] sm:$0xff] %v1602
          %1675 = vst [vmem:[%s15 + $0x68] sm:$0xff] %v1603
          %1676 = vst [vmem:[%s15 + $0x70] sm:$0xff] %v1604
          %1677 = vst [vmem:[%s15 + $0x78] sm:$0xff] %v1605
          %1678 = vst [vmem:[%s15 + $0x80] sm:$0xff] %v1606
          %1679 = vst [vmem:[%s15 + $0x88] sm:$0xff] %v1607
          %1680 = vst [vmem:[%s15 + $0x90] sm:$0xff] %v1608
          %1681 = vst [vmem:[%s15 + $0x98] sm:$0xff] %v1609
          %1682 = vst [vmem:[%s15 + $0xa0] sm:$0xff] %v1610
          %1683 = vst [vmem:[%s15 + $0xa8] sm:$0xff] %v1611
          %1684 = vst [vmem:[%s15 + $0xb0] sm:$0xff] %v1612
          %1685 = vst [vmem:[%s15 + $0xb8] sm:$0xff] %v1613
          %1686 = vst [vmem:[%s15 + $0xc0] sm:$0xff] %v1614
          %1687 = vst [vmem:[%s15 + $0xc8] sm:$0xff] %v1615
          %1688 = vst [vmem:[%s15 + $0xd0] sm:$0xff] %v1616
          %1689 = vst [vmem:[%s15 + $0xd8] sm:$0xff] %v1617
          %1690 = vst [vmem:[%s15 + $0xe0] sm:$0xff] %v1618
          %1691 = vst [vmem:[%s15 + $0xe8] sm:$0xff] %v1619
          %1692 = vst [vmem:[%s15 + $0xf0] sm:$0xff] %v1620
          %1693 = vst [vmem:[%s15 + $0xf8] sm:$0xff] %v1621
          %1694 = vst [vmem:[#allocation10] sm:$0xff] %v1640
          %1695 = vst [vmem:[#allocation10 + $0x8] sm:$0xff] %v1660
          %v1696 = vld [vmem:[%s5] sm:$0xff]
          %v1697 = vmax.f32 %v1014, 1e-30
          %v1698 = vlog2.pop %v1697
          %v1699 = vmul.f32 %v1698, 0.6931472
          %v1700 = vmul.f32 %v1696, %v1699
          %v1701 = vmul.f32 %v1696, 0.5772
          %v1702 = vmul.f32 %v1701, %v1013
          %v1703 = vsub.f32 %v1700, %v1702
          %v1704 = vmax.f32 %v1013, 1e-30
          %v1705 = vlog2.pop %v1704
          %v1706 = vmul.f32 %v1705, 0.6931472
          %v1707 = vadd.f32 %v1703, %v1706
          %v1708 = vld [vmem:[#allocation4] sm:$0xff]
          %v1709 = vmul.f32 %v1014, %v1708
          %v1710 = vsub.f32 %v1707, %v1709
          %1711 = vadd.xlane.f32.xlu0 %v1710
          %v1712 = vpop.xlane.xlu0 %1711
          %v1713 = vrot.slane %v1712, 4
          %v1714 = vadd.f32 %v1712, %v1713
          %v1715 = vrot.slane %v1714, 2
          %v1716 = vadd.f32 %v1714, %v1715
          %v1717 = vrot.slane %v1716, 1
          %v1718 = vadd.f32 %v1716, %v1717
          %vm1719 = vcmask 0
          %1720 = vst.msk [vmem:[#allocation8] sm:$0x1] %vm1719, %v1718
          %v1721 = vld [vmem:[%s12] sm:$0xff]
          %v1722 = vld [vmem:[%s12 + $0x8] sm:$0xff]
          %v1723 = vmax.f32 %v1640, 1e-30
          %v1724 = vmax.f32 %v1660, 1e-30
          %v1725 = vlog2.pop %v1723
          %v1726 = vmul.f32 %v1725, 0.6931472
          %v1727 = vlog2.pop %v1724
          %v1728 = vmul.f32 %v1727, 0.6931472
          %v1729 = vmul.f32 %v1721, %v1726
          %v1730 = vmul.f32 %v1722, %v1728
          %v1731 = vsub.f32 %v1729, %v1640
          %v1732 = vsub.f32 %v1730, %v1660
          %v1733 = vadd.f32 %v1731, %v1732
          %1734 = vadd.xlane.f32.xlu0 %v1733
          %v1735 = vpop.xlane.xlu0 %1734
          %v1736 = vrot.slane %v1735, 4
          %v1737 = vadd.f32 %v1735, %v1736
          %v1738 = vrot.slane %v1737, 2
          %v1739 = vadd.f32 %v1737, %v1738
          %v1740 = vrot.slane %v1739, 1
          %v1741 = vadd.f32 %v1739, %v1740
          %1742 = vst.msk [vmem:[#allocation6] sm:$0x1] %vm1719, %v1741
        $region80: #{sawtooth_layer_forward.1} parent=71 // pred_fallthru
          _
        // Predicated region
        $region81: #{sawtooth_layer_forward.1} parent=71 // pred_check
          %p1743 = pneg %p323
        $region82: #{sawtooth_layer_forward.1} parent=71 // pred_check_branch
          %1745 = sbr.rel (%p1743) target = $region84
        $region83: #{sawtooth_layer_forward.1} parent=71 // pred_region
          %1747 = vsyncadd [#allocation7], 0
          %s1749 = sshll.u32 [#allocation6], 4
          %s1750 = int_to_ptr.vmem [resolvable:$true] %s1749
          %s1751 = sshll.u32 %s13, 4
          %s1752 = int_to_ptr.hbm [resolvable:$true] %s1751
          %1754 = dma.vmem_to_hbm [thread:$0]  %s1750, 16, %s1752, [#allocation7]
        $region84: #{sawtooth_layer_forward.1} parent=71 // pred_fallthru
          _
        // Predicated region
        $region85: #{sawtooth_layer_forward.1} parent=71 // pred_check
          %p1755 = pneg %p344
        $region86: #{sawtooth_layer_forward.1} parent=71 // pred_check_branch
          %1757 = sbr.rel (%p1755) target = $region88
        $region87: #{sawtooth_layer_forward.1} parent=71 // pred_region
          %1759 = vsyncadd [#allocation9], 0
          %s1761 = sshll.u32 [#allocation8], 4
          %s1762 = int_to_ptr.vmem [resolvable:$true] %s1761
          %s1763 = sshll.u32 %s14, 4
          %s1764 = int_to_ptr.hbm [resolvable:$true] %s1763
          %1766 = dma.vmem_to_hbm [thread:$0]  %s1762, 16, %s1764, [#allocation9]
        $region88: #{sawtooth_layer_forward.1} parent=71 // pred_fallthru
          _
        // Predicated region
        $region89: #{sawtooth_layer_forward.1} parent=71 // pred_check
          %p1767 = pneg %p365
        $region90: #{sawtooth_layer_forward.1} parent=71 // pred_check_branch
          %1769 = sbr.rel (%p1767) target = $region92
        $region91: #{sawtooth_layer_forward.1} parent=71 // pred_region
          _
        $region92: #{sawtooth_layer_forward.1} parent=71 // pred_fallthru
          _
        // Predicated region
        $region93: #{sawtooth_layer_forward.1} parent=71 // pred_check
          %p1770 = pneg %p386
        $region94: #{sawtooth_layer_forward.1} parent=71 // pred_check_branch
          %1772 = sbr.rel (%p1770) target = $region96
        $region95: #{sawtooth_layer_forward.1} parent=71 // pred_region
          %1774 = vsyncadd [#allocation9], 0
          %s1776 = sshll.u32 [#allocation10], 4
          %s1777 = int_to_ptr.vmem [resolvable:$true] %s1776
          %s1778 = sshll.u32 %s16, 4
          %s1779 = int_to_ptr.hbm [resolvable:$true] %s1778
          %1781 = dma.vmem_to_hbm [thread:$0]  %s1777, 256, %s1779, [#allocation9]
        $region96: #{sawtooth_layer_forward.1} parent=71 // pred_fallthru
          _
        // Predicated region
        $region97: #{sawtooth_layer_forward.1} parent=71 // pred_check
          %p1782 = pneg %p407
        $region98: #{sawtooth_layer_forward.1} parent=71 // pred_check_branch
          %1784 = sbr.rel (%p1782) target = $region100
        $region99: #{sawtooth_layer_forward.1} parent=71 // pred_region
          %1786 = vsyncadd [#allocation12], 0
          %s1788 = sshll.u32 [#allocation11], 4
          %s1789 = int_to_ptr.vmem [resolvable:$true] %s1788
          %s1790 = sshll.u32 %s17, 4
          %s1791 = int_to_ptr.hbm [resolvable:$true] %s1790
          %1793 = dma.vmem_to_hbm [thread:$0]  %s1789, 128, %s1791, [#allocation12]
        $region100: #{sawtooth_layer_forward.1} parent=71 // pred_fallthru
          _
        // Predicated region
        $region101: #{sawtooth_layer_forward.1} parent=71 // pred_check
          %p1794 = pneg %p323
        $region102: #{sawtooth_layer_forward.1} parent=71 // pred_check_branch
          %1796 = sbr.rel (%p1794) target = $region104
        $region103: #{sawtooth_layer_forward.1} parent=71 // pred_region
          %1798 = dma.done [#allocation7], 16
        $region104: #{sawtooth_layer_forward.1} parent=71 // pred_fallthru
          _
        // Predicated region
        $region105: #{sawtooth_layer_forward.1} parent=71 // pred_check
          %p1799 = pneg %p344
        $region106: #{sawtooth_layer_forward.1} parent=71 // pred_check_branch
          %1801 = sbr.rel (%p1799) target = $region108
        $region107: #{sawtooth_layer_forward.1} parent=71 // pred_region
          %1803 = dma.done [#allocation9], 16
        $region108: #{sawtooth_layer_forward.1} parent=71 // pred_fallthru
          _
        // Predicated region
        $region109: #{sawtooth_layer_forward.1} parent=71 // pred_check
          %p1804 = pneg %p365
        $region110: #{sawtooth_layer_forward.1} parent=71 // pred_check_branch
          %1806 = sbr.rel (%p1804) target = $region112
        $region111: #{sawtooth_layer_forward.1} parent=71 // pred_region
          _
        $region112: #{sawtooth_layer_forward.1} parent=71 // pred_fallthru
          _
        // Predicated region
        $region113: #{sawtooth_layer_forward.1} parent=71 // pred_check
          %p1807 = pneg %p386
        $region114: #{sawtooth_layer_forward.1} parent=71 // pred_check_branch
          %1809 = sbr.rel (%p1807) target = $region116
        $region115: #{sawtooth_layer_forward.1} parent=71 // pred_region
          %1811 = dma.done [#allocation9], 256
        $region116: #{sawtooth_layer_forward.1} parent=71 // pred_fallthru
          _
        // Predicated region
        $region117: #{sawtooth_layer_forward.1} parent=71 // pred_check
          %p1812 = pneg %p407
        $region118: #{sawtooth_layer_forward.1} parent=71 // pred_check_branch
          %1814 = sbr.rel (%p1812) target = $region120
        $region119: #{sawtooth_layer_forward.1} parent=71 // pred_region
          %1816 = dma.done [#allocation12], 128
        $region120: #{sawtooth_layer_forward.1} parent=71 // pred_fallthru
          _
      $region72: #{sawtooth_layer_forward.1} parent=5 // pred_fallthru
        _
      %p1817 = scmp.le.s32.totalorder 2, %s27
      // Predicated region
      $region121: #{sawtooth_layer_forward.1} parent=5 // pred_check
        %p1818 = pneg %p1817
      $region122: #{sawtooth_layer_forward.1} parent=5 // pred_check_branch
        %1820 = sbr.rel (%p1818) target = $region124
      $region123: #{sawtooth_layer_forward.1} parent=5 // pred_region
        %s1821 = ssub.s32 %s27, 2
      $region124: #{sawtooth_layer_forward.1} parent=5 // pred_fallthru
        _
    $region6: #{sawtooth_layer_forward.1} parent=1 // loop_footer
      %s31 = sadd.s32 1, %s27
    $region7: #{sawtooth_layer_forward.1} parent=1 // loop_footer_branch
      %26 = sbr.rel target = $region3
    $region8: #{sawtooth_layer_forward.1} parent=1 // loop_exit
      _
    %1822 = vsyncpa [#allocation7], 1
    %s1823 = scalar_lea.sflag [#allocation7], 1
    %1824 = vsyncpa %s1823, 1
    %1825 = vsyncpa [#allocation9], 1
    %1826 = vsyncpa [#allocation12], 1

</llo_original>
